<compile_context>
chip_gen: v5e
topology: v5e:2x2
jax: 0.10.0
libtpu: 0.0.40
codegen_flags: <defaults>
</compile_context>

<pallas_src>
import jax
import jax.numpy as jnp
import numpy as np
from jax import lax
from jax.experimental import pallas as pl
from jax.experimental.pallas import tpu as pltpu


def _make_gru_kernel(t_total, t_chunk):
    needs_mask = (t_total % t_chunk) != 0

    def kernel(gi_ref, whh_ref, bhh_ref, out_ref, h_ref):
        c = pl.program_id(0)

        @pl.when(c == 0)
        def _init():
            h_ref[...] = jnp.zeros_like(h_ref)

        # hidden->gate weights & biases (gate-major); loaded once per chunk,
        # kept as loop constants of the fori_loop.
        w_r = whh_ref[0]          # (H, H) = W_hh_r^T
        w_z = whh_ref[1]
        w_n = whh_ref[2]
        b_r = bhh_ref[0]          # (1, H)
        b_z = bhh_ref[1]
        b_n = bhh_ref[2]

        base = c * t_chunk

        def step(t, h):
            gi_t = gi_ref[t]      # (3, B_pad, H): precomputed input projection
            gh_r = jnp.dot(h, w_r, preferred_element_type=jnp.float32) + b_r
            gh_z = jnp.dot(h, w_z, preferred_element_type=jnp.float32) + b_z
            gh_n = jnp.dot(h, w_n, preferred_element_type=jnp.float32) + b_n
            r = jax.nn.sigmoid(gi_t[0] + gh_r)
            z = jax.nn.sigmoid(gi_t[1] + gh_z)
            n = jnp.tanh(gi_t[2] + r * gh_n)
            h_new = (1.0 - z) * n + z * h
            if needs_mask:        # padded timesteps (last chunk) leave h unchanged
                h_new = jnp.where(base + t < t_total, h_new, h)
            return h_new

        h = lax.fori_loop(0, t_chunk, step, h_ref[...],
                          unroll=(t_chunk <= 32))
        h_ref[...] = h

        @pl.when(c == pl.num_programs(0) - 1)
        def _finalize():
            out_ref[...] = h      # lane-dense (B_pad, H) store

    return kernel


def simple_gru_forward(x_btf, w_ih, w_hh, b_ih, b_hh, w_fc, b_fc, *, t_chunk=128):
    """x_btf: [B, T, F] float32 (PyTorch batch_first). Returns [B]."""
    x_btf = jnp.asarray(x_btf, jnp.float32)
    B, T, F = x_btf.shape
    H = w_hh.shape[1]

    B_pad = max(8, -(-B // 8) * 8)                 # sublane-friendly batch
    t_chunk = int(min(t_chunk, T))
    n_chunks = pl.cdiv(T, t_chunk)
    T_pad = n_chunks * t_chunk

    # ---- hoisted input projection: one big (B*T, F) x (F, 3H) matmul ----
    gi = jnp.dot(x_btf.reshape(B * T, F), w_ih.T,
                 preferred_element_type=jnp.float32) + b_ih        # [B*T, 3H]
    gi = gi.reshape(B, T, 3, H).transpose(1, 2, 0, 3)              # [T, 3, B, H]
    gi = jnp.pad(gi, ((0, T_pad - T), (0, 0), (0, B_pad - B), (0, 0)))

    # gate-major hidden weights: whh[g] = W_hh_g^T, g in (r, z, n)
    whh = jnp.transpose(w_hh.reshape(3, H, H), (0, 2, 1))          # [3, H, H]
    bhh = b_hh.reshape(3, 1, H)                                    # [3, 1, H]

    h_final = pl.pallas_call(
        _make_gru_kernel(T, t_chunk),
        out_shape=jax.ShapeDtypeStruct((B_pad, H), jnp.float32),
        grid_spec=pltpu.PrefetchScalarGridSpec(
            num_scalar_prefetch=0,
            grid=(n_chunks,),
            in_specs=[
                pl.BlockSpec((t_chunk, 3, B_pad, H), lambda c: (c, 0, 0, 0)),  # gi chunk
                pl.BlockSpec((3, H, H), lambda c: (0, 0, 0)),                  # W_hh^T (resident)
                pl.BlockSpec((3, 1, H), lambda c: (0, 0, 0)),                  # b_hh (resident)
            ],
            out_specs=pl.BlockSpec((B_pad, H), lambda c: (0, 0)),
            scratch_shapes=[pltpu.VMEM((B_pad, H), jnp.float32)],              # hidden state
        ),
        compiler_params=pltpu.CompilerParams(
            dimension_semantics=("arbitrary",)),   # time chunks are inherently serial
    )(gi, whh, bhh)

    # final Linear(hidden, 1) on the lane-dense hidden state (wrapper-side)
    y = jnp.dot(h_final[:B], w_fc.T) + b_fc                        # [B, 1]
    return y[:, 0]


def _reference_forward(x_btf, w_ih, w_hh, b_ih, b_hh, w_fc, b_fc):
    """Pure-JAX reference matching torch.nn.GRU semantics."""
    B, T, F = x_btf.shape
    H = w_hh.shape[1]
    h = jnp.zeros((B, H), jnp.float32)

    def step(h, x_t):
        gi = x_t @ w_ih.T + b_ih
        gh = h @ w_hh.T + b_hh
        i_r, i_z, i_n = jnp.split(gi, 3, axis=-1)
        h_r, h_z, h_n = jnp.split(gh, 3, axis=-1)
        r = jax.nn.sigmoid(i_r + h_r)
        z = jax.nn.sigmoid(i_z + h_z)
        n = jnp.tanh(i_n + r * h_n)
        h_new = (1.0 - z) * n + z * h
        return h_new, None

    h, _ = lax.scan(step, h, jnp.transpose(x_btf, (1, 0, 2)))
    return (h @ w_fc.T + b_fc)[:, 0]


if __name__ == "__main__":
    B, T, F, H = 2, 8, 4, 64

    key = jax.random.PRNGKey(0)
    ks = jax.random.split(key, 8)
    bound = 1.0 / np.sqrt(H)   # PyTorch default init range for GRU / Linear

    x = jax.random.normal(ks[0], (B, T, F), jnp.float32)
    w_ih = jax.random.uniform(ks[1], (3 * H, F), jnp.float32, -bound, bound)
    w_hh = jax.random.uniform(ks[2], (3 * H, H), jnp.float32, -bound, bound)
    b_ih = jax.random.uniform(ks[3], (3 * H,), jnp.float32, -bound, bound)
    b_hh = jax.random.uniform(ks[4], (3 * H,), jnp.float32, -bound, bound)
    w_fc = jax.random.uniform(ks[5], (1, H), jnp.float32, -bound, bound)
    b_fc = jax.random.uniform(ks[6], (1,), jnp.float32, -bound, bound)

    out = simple_gru_forward(x, w_ih, w_hh, b_ih, b_hh, w_fc, b_fc)
    out = jax.block_until_ready(out)

    ref = _reference_forward(x, w_ih, w_hh, b_ih, b_hh, w_fc, b_fc)
    assert out.shape == (B,)
    np.testing.assert_allclose(np.asarray(out), np.asarray(ref), rtol=1e-5, atol=1e-5)

    print("KERNEL_OK")
</pallas_src>

<mosaic_0001>
module attributes {stable_mosaic.version = 11 : i64} {
  func.func @kernel(%arg0: i32, %arg1: memref<8x3x8x64xf32, #tpu.memory_space<vmem>>, %arg2: memref<3x64x64xf32, #tpu.memory_space<vmem>>, %arg3: memref<3x1x64xf32, #tpu.memory_space<vmem>>, %arg4: memref<8x64xf32, #tpu.memory_space<vmem>>, %arg5: memref<8x64xf32, #tpu.memory_space<vmem>>) attributes {dimension_semantics = [#tpu.dimension_semantics<arbitrary>], iteration_bounds = array<i64: 1>, scalar_prefetch = 0 : i64, scratch_operands = 1 : i64, tpu.core_type = #tpu.core_type<tc>, window_params = [{transform_indices = @transform_0, window_bounds = array<i64: 8, 3, 8, 64>}, {pipeline_mode = #tpu.pipeline_mode<synchronous>, transform_indices = @transform_1, window_bounds = array<i64: 3, 64, 64>}, {pipeline_mode = #tpu.pipeline_mode<synchronous>, transform_indices = @transform_2, window_bounds = array<i64: 3, 1, 64>}, {pipeline_mode = #tpu.pipeline_mode<synchronous>, transform_indices = @transform_3, window_bounds = array<i64: 8, 64>}]} {
    %c0_i32 = arith.constant 0 : i32
    %0 = arith.cmpi eq, %arg0, %c0_i32 : i32
    %1 = arith.extui %0 : i1 to i32
    %c0_i32_0 = arith.constant 0 : i32
    %2 = arith.cmpi ne, %1, %c0_i32_0 : i32
    scf.if %2 {
      %cst_94 = arith.constant 0.000000e+00 : f32
      %324 = vector.broadcast %cst_94 : f32 to vector<8x64xf32>
      %c0_95 = arith.constant 0 : index
      %c0_96 = arith.constant 0 : index
      %325 = vector.load %arg5[%c0_95, %c0_96] : memref<8x64xf32, #tpu.memory_space<vmem>>, vector<8x64xf32>
      tpu.vector_store %arg5[%c0_95, %c0_96], %324 {strides = array<i32>} : memref<8x64xf32, #tpu.memory_space<vmem>>, vector<8x64xf32>,
    } else {
    }
    %c0 = arith.constant 0 : index
    %c0_1 = arith.constant 0 : index
    %c0_2 = arith.constant 0 : index
    %3 = vector.load %arg2[%c0, %c0_1, %c0_2] : memref<3x64x64xf32, #tpu.memory_space<vmem>>, vector<1x64x64xf32>
    %4 = vector.shape_cast %3 : vector<1x64x64xf32> to vector<64x64xf32>
    %c1 = arith.constant 1 : index
    %c0_3 = arith.constant 0 : index
    %c0_4 = arith.constant 0 : index
    %5 = vector.load %arg2[%c1, %c0_3, %c0_4] : memref<3x64x64xf32, #tpu.memory_space<vmem>>, vector<1x64x64xf32>
    %6 = vector.shape_cast %5 : vector<1x64x64xf32> to vector<64x64xf32>
    %c2 = arith.constant 2 : index
    %c0_5 = arith.constant 0 : index
    %c0_6 = arith.constant 0 : index
    %7 = vector.load %arg2[%c2, %c0_5, %c0_6] : memref<3x64x64xf32, #tpu.memory_space<vmem>>, vector<1x64x64xf32>
    %8 = vector.shape_cast %7 : vector<1x64x64xf32> to vector<64x64xf32>
    %c0_7 = arith.constant 0 : index
    %c0_8 = arith.constant 0 : index
    %c0_9 = arith.constant 0 : index
    %9 = vector.load %arg3[%c0_7, %c0_8, %c0_9] : memref<3x1x64xf32, #tpu.memory_space<vmem>>, vector<1x1x64xf32>
    %10 = vector.shape_cast %9 : vector<1x1x64xf32> to vector<1x64xf32>
    %c1_10 = arith.constant 1 : index
    %c0_11 = arith.constant 0 : index
    %c0_12 = arith.constant 0 : index
    %11 = vector.load %arg3[%c1_10, %c0_11, %c0_12] : memref<3x1x64xf32, #tpu.memory_space<vmem>>, vector<1x1x64xf32>
    %12 = vector.shape_cast %11 : vector<1x1x64xf32> to vector<1x64xf32>
    %c2_13 = arith.constant 2 : index
    %c0_14 = arith.constant 0 : index
    %c0_15 = arith.constant 0 : index
    %13 = vector.load %arg3[%c2_13, %c0_14, %c0_15] : memref<3x1x64xf32, #tpu.memory_space<vmem>>, vector<1x1x64xf32>
    %14 = vector.shape_cast %13 : vector<1x1x64xf32> to vector<1x64xf32>
    %c0_16 = arith.constant 0 : index
    %c0_17 = arith.constant 0 : index
    %15 = vector.load %arg5[%c0_16, %c0_17] : memref<8x64xf32, #tpu.memory_space<vmem>>, vector<8x64xf32>
    %c0_i32_18 = arith.constant 0 : i32
    %16 = arith.index_cast %c0_i32_18 : i32 to index
    %c0_19 = arith.constant 0 : index
    %c0_20 = arith.constant 0 : index
    %c0_21 = arith.constant 0 : index
    %17 = vector.load %arg1[%16, %c0_19, %c0_20, %c0_21] : memref<8x3x8x64xf32, #tpu.memory_space<vmem>>, vector<1x3x8x64xf32>
    %18 = vector.shape_cast %17 : vector<1x3x8x64xf32> to vector<3x8x64xf32>
    %cst = arith.constant dense<0.000000e+00> : vector<8x64xf32>
    %19 = tpu.matmul %15, %4, %cst {dimension_numbers = #tpu.dot_dimension_numbers<[1], [0], [0], [1], [0, 0, 1, 1], [], []>} : vector<8x64xf32>, vector<64x64xf32>, vector<8x64xf32> -> vector<8x64xf32>
    %20 = vector.broadcast %10 : vector<1x64xf32> to vector<8x64xf32>
    %21 = arith.addf %19, %20 : vector<8x64xf32>
    %cst_22 = arith.constant dense<0.000000e+00> : vector<8x64xf32>
    %22 = tpu.matmul %15, %6, %cst_22 {dimension_numbers = #tpu.dot_dimension_numbers<[1], [0], [0], [1], [0, 0, 1, 1], [], []>} : vector<8x64xf32>, vector<64x64xf32>, vector<8x64xf32> -> vector<8x64xf32>
    %23 = vector.broadcast %12 : vector<1x64xf32> to vector<8x64xf32>
    %24 = arith.addf %22, %23 : vector<8x64xf32>
    %cst_23 = arith.constant dense<0.000000e+00> : vector<8x64xf32>
    %25 = tpu.matmul %15, %8, %cst_23 {dimension_numbers = #tpu.dot_dimension_numbers<[1], [0], [0], [1], [0, 0, 1, 1], [], []>} : vector<8x64xf32>, vector<64x64xf32>, vector<8x64xf32> -> vector<8x64xf32>
    %26 = vector.broadcast %14 : vector<1x64xf32> to vector<8x64xf32>
    %27 = arith.addf %25, %26 : vector<8x64xf32>
    %28 = vector.extract_strided_slice %18 {offsets = [0, 0, 0], sizes = [1, 8, 64], strides = [1, 1, 1]} : vector<3x8x64xf32> to vector<1x8x64xf32>
    %29 = vector.shape_cast %28 : vector<1x8x64xf32> to vector<8x64xf32>
    %30 = arith.addf %29, %21 : vector<8x64xf32>
    %31 = arith.negf %30 : vector<8x64xf32>
    %32 = math.exp %31 : vector<8x64xf32>
    %cst_24 = arith.constant 1.000000e+00 : f32
    %33 = vector.broadcast %cst_24 : f32 to vector<8x64xf32>
    %34 = arith.addf %33, %32 : vector<8x64xf32>
    %35 = arith.divf %33, %34 : vector<8x64xf32>
    %36 = vector.extract_strided_slice %18 {offsets = [1, 0, 0], sizes = [1, 8, 64], strides = [1, 1, 1]} : vector<3x8x64xf32> to vector<1x8x64xf32>
    %37 = vector.shape_cast %36 : vector<1x8x64xf32> to vector<8x64xf32>
    %38 = arith.addf %37, %24 : vector<8x64xf32>
    %39 = arith.negf %38 : vector<8x64xf32>
    %40 = math.exp %39 : vector<8x64xf32>
    %cst_25 = arith.constant 1.000000e+00 : f32
    %41 = vector.broadcast %cst_25 : f32 to vector<8x64xf32>
    %42 = arith.addf %41, %40 : vector<8x64xf32>
    %43 = arith.divf %41, %42 : vector<8x64xf32>
    %44 = vector.extract_strided_slice %18 {offsets = [2, 0, 0], sizes = [1, 8, 64], strides = [1, 1, 1]} : vector<3x8x64xf32> to vector<1x8x64xf32>
    %45 = vector.shape_cast %44 : vector<1x8x64xf32> to vector<8x64xf32>
    %46 = arith.mulf %35, %27 : vector<8x64xf32>
    %47 = arith.addf %45, %46 : vector<8x64xf32>
    %48 = math.tanh %47 : vector<8x64xf32>
    %cst_26 = arith.constant 1.000000e+00 : f32
    %49 = vector.broadcast %cst_26 : f32 to vector<8x64xf32>
    %50 = arith.subf %49, %43 : vector<8x64xf32>
    %51 = arith.mulf %50, %48 : vector<8x64xf32>
    %52 = arith.mulf %43, %15 : vector<8x64xf32>
    %53 = arith.addf %51, %52 : vector<8x64xf32>
    %c1_i32 = arith.constant 1 : i32
    %54 = arith.index_cast %c1_i32 : i32 to index
    %c0_27 = arith.constant 0 : index
    %c0_28 = arith.constant 0 : index
    %c0_29 = arith.constant 0 : index
    %55 = vector.load %arg1[%54, %c0_27, %c0_28, %c0_29] : memref<8x3x8x64xf32, #tpu.memory_space<vmem>>, vector<1x3x8x64xf32>
    %56 = vector.shape_cast %55 : vector<1x3x8x64xf32> to vector<3x8x64xf32>
    %cst_30 = arith.constant dense<0.000000e+00> : vector<8x64xf32>
    %57 = tpu.matmul %53, %4, %cst_30 {dimension_numbers = #tpu.dot_dimension_numbers<[1], [0], [0], [1], [0, 0, 1, 1], [], []>} : vector<8x64xf32>, vector<64x64xf32>, vector<8x64xf32> -> vector<8x64xf32>
    %58 = vector.broadcast %10 : vector<1x64xf32> to vector<8x64xf32>
    %59 = arith.addf %57, %58 : vector<8x64xf32>
    %cst_31 = arith.constant dense<0.000000e+00> : vector<8x64xf32>
    %60 = tpu.matmul %53, %6, %cst_31 {dimension_numbers = #tpu.dot_dimension_numbers<[1], [0], [0], [1], [0, 0, 1, 1], [], []>} : vector<8x64xf32>, vector<64x64xf32>, vector<8x64xf32> -> vector<8x64xf32>
    %61 = vector.broadcast %12 : vector<1x64xf32> to vector<8x64xf32>
    %62 = arith.addf %60, %61 : vector<8x64xf32>
    %cst_32 = arith.constant dense<0.000000e+00> : vector<8x64xf32>
    %63 = tpu.matmul %53, %8, %cst_32 {dimension_numbers = #tpu.dot_dimension_numbers<[1], [0], [0], [1], [0, 0, 1, 1], [], []>} : vector<8x64xf32>, vector<64x64xf32>, vector<8x64xf32> -> vector<8x64xf32>
    %64 = vector.broadcast %14 : vector<1x64xf32> to vector<8x64xf32>
    %65 = arith.addf %63, %64 : vector<8x64xf32>
    %66 = vector.extract_strided_slice %56 {offsets = [0, 0, 0], sizes = [1, 8, 64], strides = [1, 1, 1]} : vector<3x8x64xf32> to vector<1x8x64xf32>
    %67 = vector.shape_cast %66 : vector<1x8x64xf32> to vector<8x64xf32>
    %68 = arith.addf %67, %59 : vector<8x64xf32>
    %69 = arith.negf %68 : vector<8x64xf32>
    %70 = math.exp %69 : vector<8x64xf32>
    %cst_33 = arith.constant 1.000000e+00 : f32
    %71 = vector.broadcast %cst_33 : f32 to vector<8x64xf32>
    %72 = arith.addf %71, %70 : vector<8x64xf32>
    %73 = arith.divf %71, %72 : vector<8x64xf32>
    %74 = vector.extract_strided_slice %56 {offsets = [1, 0, 0], sizes = [1, 8, 64], strides = [1, 1, 1]} : vector<3x8x64xf32> to vector<1x8x64xf32>
    %75 = vector.shape_cast %74 : vector<1x8x64xf32> to vector<8x64xf32>
    %76 = arith.addf %75, %62 : vector<8x64xf32>
    %77 = arith.negf %76 : vector<8x64xf32>
    %78 = math.exp %77 : vector<8x64xf32>
    %cst_34 = arith.constant 1.000000e+00 : f32
    %79 = vector.broadcast %cst_34 : f32 to vector<8x64xf32>
    %80 = arith.addf %79, %78 : vector<8x64xf32>
    %81 = arith.divf %79, %80 : vector<8x64xf32>
    %82 = vector.extract_strided_slice %56 {offsets = [2, 0, 0], sizes = [1, 8, 64], strides = [1, 1, 1]} : vector<3x8x64xf32> to vector<1x8x64xf32>
    %83 = vector.shape_cast %82 : vector<1x8x64xf32> to vector<8x64xf32>
    %84 = arith.mulf %73, %65 : vector<8x64xf32>
    %85 = arith.addf %83, %84 : vector<8x64xf32>
    %86 = math.tanh %85 : vector<8x64xf32>
    %cst_35 = arith.constant 1.000000e+00 : f32
    %87 = vector.broadcast %cst_35 : f32 to vector<8x64xf32>
    %88 = arith.subf %87, %81 : vector<8x64xf32>
    %89 = arith.mulf %88, %86 : vector<8x64xf32>
    %90 = arith.mulf %81, %53 : vector<8x64xf32>
    %91 = arith.addf %89, %90 : vector<8x64xf32>
    %c2_i32 = arith.constant 2 : i32
    %92 = arith.index_cast %c2_i32 : i32 to index
    %c0_36 = arith.constant 0 : index
    %c0_37 = arith.constant 0 : index
    %c0_38 = arith.constant 0 : index
    %93 = vector.load %arg1[%92, %c0_36, %c0_37, %c0_38] : memref<8x3x8x64xf32, #tpu.memory_space<vmem>>, vector<1x3x8x64xf32>
    %94 = vector.shape_cast %93 : vector<1x3x8x64xf32> to vector<3x8x64xf32>
    %cst_39 = arith.constant dense<0.000000e+00> : vector<8x64xf32>
    %95 = tpu.matmul %91, %4, %cst_39 {dimension_numbers = #tpu.dot_dimension_numbers<[1], [0], [0], [1], [0, 0, 1, 1], [], []>} : vector<8x64xf32>, vector<64x64xf32>, vector<8x64xf32> -> vector<8x64xf32>
    %96 = vector.broadcast %10 : vector<1x64xf32> to vector<8x64xf32>
    %97 = arith.addf %95, %96 : vector<8x64xf32>
    %cst_40 = arith.constant dense<0.000000e+00> : vector<8x64xf32>
    %98 = tpu.matmul %91, %6, %cst_40 {dimension_numbers = #tpu.dot_dimension_numbers<[1], [0], [0], [1], [0, 0, 1, 1], [], []>} : vector<8x64xf32>, vector<64x64xf32>, vector<8x64xf32> -> vector<8x64xf32>
    %99 = vector.broadcast %12 : vector<1x64xf32> to vector<8x64xf32>
    %100 = arith.addf %98, %99 : vector<8x64xf32>
    %cst_41 = arith.constant dense<0.000000e+00> : vector<8x64xf32>
    %101 = tpu.matmul %91, %8, %cst_41 {dimension_numbers = #tpu.dot_dimension_numbers<[1], [0], [0], [1], [0, 0, 1, 1], [], []>} : vector<8x64xf32>, vector<64x64xf32>, vector<8x64xf32> -> vector<8x64xf32>
    %102 = vector.broadcast %14 : vector<1x64xf32> to vector<8x64xf32>
    %103 = arith.addf %101, %102 : vector<8x64xf32>
    %104 = vector.extract_strided_slice %94 {offsets = [0, 0, 0], sizes = [1, 8, 64], strides = [1, 1, 1]} : vector<3x8x64xf32> to vector<1x8x64xf32>
    %105 = vector.shape_cast %104 : vector<1x8x64xf32> to vector<8x64xf32>
    %106 = arith.addf %105, %97 : vector<8x64xf32>
    %107 = arith.negf %106 : vector<8x64xf32>
    %108 = math.exp %107 : vector<8x64xf32>
    %cst_42 = arith.constant 1.000000e+00 : f32
    %109 = vector.broadcast %cst_42 : f32 to vector<8x64xf32>
    %110 = arith.addf %109, %108 : vector<8x64xf32>
    %111 = arith.divf %109, %110 : vector<8x64xf32>
    %112 = vector.extract_strided_slice %94 {offsets = [1, 0, 0], sizes = [1, 8, 64], strides = [1, 1, 1]} : vector<3x8x64xf32> to vector<1x8x64xf32>
    %113 = vector.shape_cast %112 : vector<1x8x64xf32> to vector<8x64xf32>
    %114 = arith.addf %113, %100 : vector<8x64xf32>
    %115 = arith.negf %114 : vector<8x64xf32>
    %116 = math.exp %115 : vector<8x64xf32>
    %cst_43 = arith.constant 1.000000e+00 : f32
    %117 = vector.broadcast %cst_43 : f32 to vector<8x64xf32>
    %118 = arith.addf %117, %116 : vector<8x64xf32>
    %119 = arith.divf %117, %118 : vector<8x64xf32>
    %120 = vector.extract_strided_slice %94 {offsets = [2, 0, 0], sizes = [1, 8, 64], strides = [1, 1, 1]} : vector<3x8x64xf32> to vector<1x8x64xf32>
    %121 = vector.shape_cast %120 : vector<1x8x64xf32> to vector<8x64xf32>
    %122 = arith.mulf %111, %103 : vector<8x64xf32>
    %123 = arith.addf %121, %122 : vector<8x64xf32>
    %124 = math.tanh %123 : vector<8x64xf32>
    %cst_44 = arith.constant 1.000000e+00 : f32
    %125 = vector.broadcast %cst_44 : f32 to vector<8x64xf32>
    %126 = arith.subf %125, %119 : vector<8x64xf32>
    %127 = arith.mulf %126, %124 : vector<8x64xf32>
    %128 = arith.mulf %119, %91 : vector<8x64xf32>
    %129 = arith.addf %127, %128 : vector<8x64xf32>
    %c3_i32 = arith.constant 3 : i32
    %130 = arith.index_cast %c3_i32 : i32 to index
    %c0_45 = arith.constant 0 : index
    %c0_46 = arith.constant 0 : index
    %c0_47 = arith.constant 0 : index
    %131 = vector.load %arg1[%130, %c0_45, %c0_46, %c0_47] : memref<8x3x8x64xf32, #tpu.memory_space<vmem>>, vector<1x3x8x64xf32>
    %132 = vector.shape_cast %131 : vector<1x3x8x64xf32> to vector<3x8x64xf32>
    %cst_48 = arith.constant dense<0.000000e+00> : vector<8x64xf32>
    %133 = tpu.matmul %129, %4, %cst_48 {dimension_numbers = #tpu.dot_dimension_numbers<[1], [0], [0], [1], [0, 0, 1, 1], [], []>} : vector<8x64xf32>, vector<64x64xf32>, vector<8x64xf32> -> vector<8x64xf32>
    %134 = vector.broadcast %10 : vector<1x64xf32> to vector<8x64xf32>
    %135 = arith.addf %133, %134 : vector<8x64xf32>
    %cst_49 = arith.constant dense<0.000000e+00> : vector<8x64xf32>
    %136 = tpu.matmul %129, %6, %cst_49 {dimension_numbers = #tpu.dot_dimension_numbers<[1], [0], [0], [1], [0, 0, 1, 1], [], []>} : vector<8x64xf32>, vector<64x64xf32>, vector<8x64xf32> -> vector<8x64xf32>
    %137 = vector.broadcast %12 : vector<1x64xf32> to vector<8x64xf32>
    %138 = arith.addf %136, %137 : vector<8x64xf32>
    %cst_50 = arith.constant dense<0.000000e+00> : vector<8x64xf32>
    %139 = tpu.matmul %129, %8, %cst_50 {dimension_numbers = #tpu.dot_dimension_numbers<[1], [0], [0], [1], [0, 0, 1, 1], [], []>} : vector<8x64xf32>, vector<64x64xf32>, vector<8x64xf32> -> vector<8x64xf32>
    %140 = vector.broadcast %14 : vector<1x64xf32> to vector<8x64xf32>
    %141 = arith.addf %139, %140 : vector<8x64xf32>
    %142 = vector.extract_strided_slice %132 {offsets = [0, 0, 0], sizes = [1, 8, 64], strides = [1, 1, 1]} : vector<3x8x64xf32> to vector<1x8x64xf32>
    %143 = vector.shape_cast %142 : vector<1x8x64xf32> to vector<8x64xf32>
    %144 = arith.addf %143, %135 : vector<8x64xf32>
    %145 = arith.negf %144 : vector<8x64xf32>
    %146 = math.exp %145 : vector<8x64xf32>
    %cst_51 = arith.constant 1.000000e+00 : f32
    %147 = vector.broadcast %cst_51 : f32 to vector<8x64xf32>
    %148 = arith.addf %147, %146 : vector<8x64xf32>
    %149 = arith.divf %147, %148 : vector<8x64xf32>
    %150 = vector.extract_strided_slice %132 {offsets = [1, 0, 0], sizes = [1, 8, 64], strides = [1, 1, 1]} : vector<3x8x64xf32> to vector<1x8x64xf32>
    %151 = vector.shape_cast %150 : vector<1x8x64xf32> to vector<8x64xf32>
    %152 = arith.addf %151, %138 : vector<8x64xf32>
    %153 = arith.negf %152 : vector<8x64xf32>
    %154 = math.exp %153 : vector<8x64xf32>
    %cst_52 = arith.constant 1.000000e+00 : f32
    %155 = vector.broadcast %cst_52 : f32 to vector<8x64xf32>
    %156 = arith.addf %155, %154 : vector<8x64xf32>
    %157 = arith.divf %155, %156 : vector<8x64xf32>
    %158 = vector.extract_strided_slice %132 {offsets = [2, 0, 0], sizes = [1, 8, 64], strides = [1, 1, 1]} : vector<3x8x64xf32> to vector<1x8x64xf32>
    %159 = vector.shape_cast %158 : vector<1x8x64xf32> to vector<8x64xf32>
    %160 = arith.mulf %149, %141 : vector<8x64xf32>
    %161 = arith.addf %159, %160 : vector<8x64xf32>
    %162 = math.tanh %161 : vector<8x64xf32>
    %cst_53 = arith.constant 1.000000e+00 : f32
    %163 = vector.broadcast %cst_53 : f32 to vector<8x64xf32>
    %164 = arith.subf %163, %157 : vector<8x64xf32>
    %165 = arith.mulf %164, %162 : vector<8x64xf32>
    %166 = arith.mulf %157, %129 : vector<8x64xf32>
    %167 = arith.addf %165, %166 : vector<8x64xf32>
    %c4_i32 = arith.constant 4 : i32
    %168 = arith.index_cast %c4_i32 : i32 to index
    %c0_54 = arith.constant 0 : index
    %c0_55 = arith.constant 0 : index
    %c0_56 = arith.constant 0 : index
    %169 = vector.load %arg1[%168, %c0_54, %c0_55, %c0_56] : memref<8x3x8x64xf32, #tpu.memory_space<vmem>>, vector<1x3x8x64xf32>
    %170 = vector.shape_cast %169 : vector<1x3x8x64xf32> to vector<3x8x64xf32>
    %cst_57 = arith.constant dense<0.000000e+00> : vector<8x64xf32>
    %171 = tpu.matmul %167, %4, %cst_57 {dimension_numbers = #tpu.dot_dimension_numbers<[1], [0], [0], [1], [0, 0, 1, 1], [], []>} : vector<8x64xf32>, vector<64x64xf32>, vector<8x64xf32> -> vector<8x64xf32>
    %172 = vector.broadcast %10 : vector<1x64xf32> to vector<8x64xf32>
    %173 = arith.addf %171, %172 : vector<8x64xf32>
    %cst_58 = arith.constant dense<0.000000e+00> : vector<8x64xf32>
    %174 = tpu.matmul %167, %6, %cst_58 {dimension_numbers = #tpu.dot_dimension_numbers<[1], [0], [0], [1], [0, 0, 1, 1], [], []>} : vector<8x64xf32>, vector<64x64xf32>, vector<8x64xf32> -> vector<8x64xf32>
    %175 = vector.broadcast %12 : vector<1x64xf32> to vector<8x64xf32>
    %176 = arith.addf %174, %175 : vector<8x64xf32>
    %cst_59 = arith.constant dense<0.000000e+00> : vector<8x64xf32>
    %177 = tpu.matmul %167, %8, %cst_59 {dimension_numbers = #tpu.dot_dimension_numbers<[1], [0], [0], [1], [0, 0, 1, 1], [], []>} : vector<8x64xf32>, vector<64x64xf32>, vector<8x64xf32> -> vector<8x64xf32>
    %178 = vector.broadcast %14 : vector<1x64xf32> to vector<8x64xf32>
    %179 = arith.addf %177, %178 : vector<8x64xf32>
    %180 = vector.extract_strided_slice %170 {offsets = [0, 0, 0], sizes = [1, 8, 64], strides = [1, 1, 1]} : vector<3x8x64xf32> to vector<1x8x64xf32>
    %181 = vector.shape_cast %180 : vector<1x8x64xf32> to vector<8x64xf32>
    %182 = arith.addf %181, %173 : vector<8x64xf32>
    %183 = arith.negf %182 : vector<8x64xf32>
    %184 = math.exp %183 : vector<8x64xf32>
    %cst_60 = arith.constant 1.000000e+00 : f32
    %185 = vector.broadcast %cst_60 : f32 to vector<8x64xf32>
    %186 = arith.addf %185, %184 : vector<8x64xf32>
    %187 = arith.divf %185, %186 : vector<8x64xf32>
    %188 = vector.extract_strided_slice %170 {offsets = [1, 0, 0], sizes = [1, 8, 64], strides = [1, 1, 1]} : vector<3x8x64xf32> to vector<1x8x64xf32>
    %189 = vector.shape_cast %188 : vector<1x8x64xf32> to vector<8x64xf32>
    %190 = arith.addf %189, %176 : vector<8x64xf32>
    %191 = arith.negf %190 : vector<8x64xf32>
    %192 = math.exp %191 : vector<8x64xf32>
    %cst_61 = arith.constant 1.000000e+00 : f32
    %193 = vector.broadcast %cst_61 : f32 to vector<8x64xf32>
    %194 = arith.addf %193, %192 : vector<8x64xf32>
    %195 = arith.divf %193, %194 : vector<8x64xf32>
    %196 = vector.extract_strided_slice %170 {offsets = [2, 0, 0], sizes = [1, 8, 64], strides = [1, 1, 1]} : vector<3x8x64xf32> to vector<1x8x64xf32>
    %197 = vector.shape_cast %196 : vector<1x8x64xf32> to vector<8x64xf32>
    %198 = arith.mulf %187, %179 : vector<8x64xf32>
    %199 = arith.addf %197, %198 : vector<8x64xf32>
    %200 = math.tanh %199 : vector<8x64xf32>
    %cst_62 = arith.constant 1.000000e+00 : f32
    %201 = vector.broadcast %cst_62 : f32 to vector<8x64xf32>
    %202 = arith.subf %201, %195 : vector<8x64xf32>
    %203 = arith.mulf %202, %200 : vector<8x64xf32>
    %204 = arith.mulf %195, %167 : vector<8x64xf32>
    %205 = arith.addf %203, %204 : vector<8x64xf32>
    %c5_i32 = arith.constant 5 : i32
    %206 = arith.index_cast %c5_i32 : i32 to index
    %c0_63 = arith.constant 0 : index
    %c0_64 = arith.constant 0 : index
    %c0_65 = arith.constant 0 : index
    %207 = vector.load %arg1[%206, %c0_63, %c0_64, %c0_65] : memref<8x3x8x64xf32, #tpu.memory_space<vmem>>, vector<1x3x8x64xf32>
    %208 = vector.shape_cast %207 : vector<1x3x8x64xf32> to vector<3x8x64xf32>
    %cst_66 = arith.constant dense<0.000000e+00> : vector<8x64xf32>
    %209 = tpu.matmul %205, %4, %cst_66 {dimension_numbers = #tpu.dot_dimension_numbers<[1], [0], [0], [1], [0, 0, 1, 1], [], []>} : vector<8x64xf32>, vector<64x64xf32>, vector<8x64xf32> -> vector<8x64xf32>
    %210 = vector.broadcast %10 : vector<1x64xf32> to vector<8x64xf32>
    %211 = arith.addf %209, %210 : vector<8x64xf32>
    %cst_67 = arith.constant dense<0.000000e+00> : vector<8x64xf32>
    %212 = tpu.matmul %205, %6, %cst_67 {dimension_numbers = #tpu.dot_dimension_numbers<[1], [0], [0], [1], [0, 0, 1, 1], [], []>} : vector<8x64xf32>, vector<64x64xf32>, vector<8x64xf32> -> vector<8x64xf32>
    %213 = vector.broadcast %12 : vector<1x64xf32> to vector<8x64xf32>
    %214 = arith.addf %212, %213 : vector<8x64xf32>
    %cst_68 = arith.constant dense<0.000000e+00> : vector<8x64xf32>
    %215 = tpu.matmul %205, %8, %cst_68 {dimension_numbers = #tpu.dot_dimension_numbers<[1], [0], [0], [1], [0, 0, 1, 1], [], []>} : vector<8x64xf32>, vector<64x64xf32>, vector<8x64xf32> -> vector<8x64xf32>
    %216 = vector.broadcast %14 : vector<1x64xf32> to vector<8x64xf32>
    %217 = arith.addf %215, %216 : vector<8x64xf32>
    %218 = vector.extract_strided_slice %208 {offsets = [0, 0, 0], sizes = [1, 8, 64], strides = [1, 1, 1]} : vector<3x8x64xf32> to vector<1x8x64xf32>
    %219 = vector.shape_cast %218 : vector<1x8x64xf32> to vector<8x64xf32>
    %220 = arith.addf %219, %211 : vector<8x64xf32>
    %221 = arith.negf %220 : vector<8x64xf32>
    %222 = math.exp %221 : vector<8x64xf32>
    %cst_69 = arith.constant 1.000000e+00 : f32
    %223 = vector.broadcast %cst_69 : f32 to vector<8x64xf32>
    %224 = arith.addf %223, %222 : vector<8x64xf32>
    %225 = arith.divf %223, %224 : vector<8x64xf32>
    %226 = vector.extract_strided_slice %208 {offsets = [1, 0, 0], sizes = [1, 8, 64], strides = [1, 1, 1]} : vector<3x8x64xf32> to vector<1x8x64xf32>
    %227 = vector.shape_cast %226 : vector<1x8x64xf32> to vector<8x64xf32>
    %228 = arith.addf %227, %214 : vector<8x64xf32>
    %229 = arith.negf %228 : vector<8x64xf32>
    %230 = math.exp %229 : vector<8x64xf32>
    %cst_70 = arith.constant 1.000000e+00 : f32
    %231 = vector.broadcast %cst_70 : f32 to vector<8x64xf32>
    %232 = arith.addf %231, %230 : vector<8x64xf32>
    %233 = arith.divf %231, %232 : vector<8x64xf32>
    %234 = vector.extract_strided_slice %208 {offsets = [2, 0, 0], sizes = [1, 8, 64], strides = [1, 1, 1]} : vector<3x8x64xf32> to vector<1x8x64xf32>
    %235 = vector.shape_cast %234 : vector<1x8x64xf32> to vector<8x64xf32>
    %236 = arith.mulf %225, %217 : vector<8x64xf32>
    %237 = arith.addf %235, %236 : vector<8x64xf32>
    %238 = math.tanh %237 : vector<8x64xf32>
    %cst_71 = arith.constant 1.000000e+00 : f32
    %239 = vector.broadcast %cst_71 : f32 to vector<8x64xf32>
    %240 = arith.subf %239, %233 : vector<8x64xf32>
    %241 = arith.mulf %240, %238 : vector<8x64xf32>
    %242 = arith.mulf %233, %205 : vector<8x64xf32>
    %243 = arith.addf %241, %242 : vector<8x64xf32>
    %c6_i32 = arith.constant 6 : i32
    %244 = arith.index_cast %c6_i32 : i32 to index
    %c0_72 = arith.constant 0 : index
    %c0_73 = arith.constant 0 : index
    %c0_74 = arith.constant 0 : index
    %245 = vector.load %arg1[%244, %c0_72, %c0_73, %c0_74] : memref<8x3x8x64xf32, #tpu.memory_space<vmem>>, vector<1x3x8x64xf32>
    %246 = vector.shape_cast %245 : vector<1x3x8x64xf32> to vector<3x8x64xf32>
    %cst_75 = arith.constant dense<0.000000e+00> : vector<8x64xf32>
    %247 = tpu.matmul %243, %4, %cst_75 {dimension_numbers = #tpu.dot_dimension_numbers<[1], [0], [0], [1], [0, 0, 1, 1], [], []>} : vector<8x64xf32>, vector<64x64xf32>, vector<8x64xf32> -> vector<8x64xf32>
    %248 = vector.broadcast %10 : vector<1x64xf32> to vector<8x64xf32>
    %249 = arith.addf %247, %248 : vector<8x64xf32>
    %cst_76 = arith.constant dense<0.000000e+00> : vector<8x64xf32>
    %250 = tpu.matmul %243, %6, %cst_76 {dimension_numbers = #tpu.dot_dimension_numbers<[1], [0], [0], [1], [0, 0, 1, 1], [], []>} : vector<8x64xf32>, vector<64x64xf32>, vector<8x64xf32> -> vector<8x64xf32>
    %251 = vector.broadcast %12 : vector<1x64xf32> to vector<8x64xf32>
    %252 = arith.addf %250, %251 : vector<8x64xf32>
    %cst_77 = arith.constant dense<0.000000e+00> : vector<8x64xf32>
    %253 = tpu.matmul %243, %8, %cst_77 {dimension_numbers = #tpu.dot_dimension_numbers<[1], [0], [0], [1], [0, 0, 1, 1], [], []>} : vector<8x64xf32>, vector<64x64xf32>, vector<8x64xf32> -> vector<8x64xf32>
    %254 = vector.broadcast %14 : vector<1x64xf32> to vector<8x64xf32>
    %255 = arith.addf %253, %254 : vector<8x64xf32>
    %256 = vector.extract_strided_slice %246 {offsets = [0, 0, 0], sizes = [1, 8, 64], strides = [1, 1, 1]} : vector<3x8x64xf32> to vector<1x8x64xf32>
    %257 = vector.shape_cast %256 : vector<1x8x64xf32> to vector<8x64xf32>
    %258 = arith.addf %257, %249 : vector<8x64xf32>
    %259 = arith.negf %258 : vector<8x64xf32>
    %260 = math.exp %259 : vector<8x64xf32>
    %cst_78 = arith.constant 1.000000e+00 : f32
    %261 = vector.broadcast %cst_78 : f32 to vector<8x64xf32>
    %262 = arith.addf %261, %260 : vector<8x64xf32>
    %263 = arith.divf %261, %262 : vector<8x64xf32>
    %264 = vector.extract_strided_slice %246 {offsets = [1, 0, 0], sizes = [1, 8, 64], strides = [1, 1, 1]} : vector<3x8x64xf32> to vector<1x8x64xf32>
    %265 = vector.shape_cast %264 : vector<1x8x64xf32> to vector<8x64xf32>
    %266 = arith.addf %265, %252 : vector<8x64xf32>
    %267 = arith.negf %266 : vector<8x64xf32>
    %268 = math.exp %267 : vector<8x64xf32>
    %cst_79 = arith.constant 1.000000e+00 : f32
    %269 = vector.broadcast %cst_79 : f32 to vector<8x64xf32>
    %270 = arith.addf %269, %268 : vector<8x64xf32>
    %271 = arith.divf %269, %270 : vector<8x64xf32>
    %272 = vector.extract_strided_slice %246 {offsets = [2, 0, 0], sizes = [1, 8, 64], strides = [1, 1, 1]} : vector<3x8x64xf32> to vector<1x8x64xf32>
    %273 = vector.shape_cast %272 : vector<1x8x64xf32> to vector<8x64xf32>
    %274 = arith.mulf %263, %255 : vector<8x64xf32>
    %275 = arith.addf %273, %274 : vector<8x64xf32>
    %276 = math.tanh %275 : vector<8x64xf32>
    %cst_80 = arith.constant 1.000000e+00 : f32
    %277 = vector.broadcast %cst_80 : f32 to vector<8x64xf32>
    %278 = arith.subf %277, %271 : vector<8x64xf32>
    %279 = arith.mulf %278, %276 : vector<8x64xf32>
    %280 = arith.mulf %271, %243 : vector<8x64xf32>
    %281 = arith.addf %279, %280 : vector<8x64xf32>
    %c7_i32 = arith.constant 7 : i32
    %282 = arith.index_cast %c7_i32 : i32 to index
    %c0_81 = arith.constant 0 : index
    %c0_82 = arith.constant 0 : index
    %c0_83 = arith.constant 0 : index
    %283 = vector.load %arg1[%282, %c0_81, %c0_82, %c0_83] : memref<8x3x8x64xf32, #tpu.memory_space<vmem>>, vector<1x3x8x64xf32>
    %284 = vector.shape_cast %283 : vector<1x3x8x64xf32> to vector<3x8x64xf32>
    %cst_84 = arith.constant dense<0.000000e+00> : vector<8x64xf32>
    %285 = tpu.matmul %281, %4, %cst_84 {dimension_numbers = #tpu.dot_dimension_numbers<[1], [0], [0], [1], [0, 0, 1, 1], [], []>} : vector<8x64xf32>, vector<64x64xf32>, vector<8x64xf32> -> vector<8x64xf32>
    %286 = vector.broadcast %10 : vector<1x64xf32> to vector<8x64xf32>
    %287 = arith.addf %285, %286 : vector<8x64xf32>
    %cst_85 = arith.constant dense<0.000000e+00> : vector<8x64xf32>
    %288 = tpu.matmul %281, %6, %cst_85 {dimension_numbers = #tpu.dot_dimension_numbers<[1], [0], [0], [1], [0, 0, 1, 1], [], []>} : vector<8x64xf32>, vector<64x64xf32>, vector<8x64xf32> -> vector<8x64xf32>
    %289 = vector.broadcast %12 : vector<1x64xf32> to vector<8x64xf32>
    %290 = arith.addf %288, %289 : vector<8x64xf32>
    %cst_86 = arith.constant dense<0.000000e+00> : vector<8x64xf32>
    %291 = tpu.matmul %281, %8, %cst_86 {dimension_numbers = #tpu.dot_dimension_numbers<[1], [0], [0], [1], [0, 0, 1, 1], [], []>} : vector<8x64xf32>, vector<64x64xf32>, vector<8x64xf32> -> vector<8x64xf32>
    %292 = vector.broadcast %14 : vector<1x64xf32> to vector<8x64xf32>
    %293 = arith.addf %291, %292 : vector<8x64xf32>
    %294 = vector.extract_strided_slice %284 {offsets = [0, 0, 0], sizes = [1, 8, 64], strides = [1, 1, 1]} : vector<3x8x64xf32> to vector<1x8x64xf32>
    %295 = vector.shape_cast %294 : vector<1x8x64xf32> to vector<8x64xf32>
    %296 = arith.addf %295, %287 : vector<8x64xf32>
    %297 = arith.negf %296 : vector<8x64xf32>
    %298 = math.exp %297 : vector<8x64xf32>
    %cst_87 = arith.constant 1.000000e+00 : f32
    %299 = vector.broadcast %cst_87 : f32 to vector<8x64xf32>
    %300 = arith.addf %299, %298 : vector<8x64xf32>
    %301 = arith.divf %299, %300 : vector<8x64xf32>
    %302 = vector.extract_strided_slice %284 {offsets = [1, 0, 0], sizes = [1, 8, 64], strides = [1, 1, 1]} : vector<3x8x64xf32> to vector<1x8x64xf32>
    %303 = vector.shape_cast %302 : vector<1x8x64xf32> to vector<8x64xf32>
    %304 = arith.addf %303, %290 : vector<8x64xf32>
    %305 = arith.negf %304 : vector<8x64xf32>
    %306 = math.exp %305 : vector<8x64xf32>
    %cst_88 = arith.constant 1.000000e+00 : f32
    %307 = vector.broadcast %cst_88 : f32 to vector<8x64xf32>
    %308 = arith.addf %307, %306 : vector<8x64xf32>
    %309 = arith.divf %307, %308 : vector<8x64xf32>
    %310 = vector.extract_strided_slice %284 {offsets = [2, 0, 0], sizes = [1, 8, 64], strides = [1, 1, 1]} : vector<3x8x64xf32> to vector<1x8x64xf32>
    %311 = vector.shape_cast %310 : vector<1x8x64xf32> to vector<8x64xf32>
    %312 = arith.mulf %301, %293 : vector<8x64xf32>
    %313 = arith.addf %311, %312 : vector<8x64xf32>
    %314 = math.tanh %313 : vector<8x64xf32>
    %cst_89 = arith.constant 1.000000e+00 : f32
    %315 = vector.broadcast %cst_89 : f32 to vector<8x64xf32>
    %316 = arith.subf %315, %309 : vector<8x64xf32>
    %317 = arith.mulf %316, %314 : vector<8x64xf32>
    %318 = arith.mulf %309, %281 : vector<8x64xf32>
    %319 = arith.addf %317, %318 : vector<8x64xf32>
    %c8_i32 = arith.constant 8 : i32
    %c0_90 = arith.constant 0 : index
    %c0_91 = arith.constant 0 : index
    %320 = vector.load %arg5[%c0_90, %c0_91] : memref<8x64xf32, #tpu.memory_space<vmem>>, vector<8x64xf32>
    tpu.vector_store %arg5[%c0_90, %c0_91], %319 {strides = array<i32>} : memref<8x64xf32, #tpu.memory_space<vmem>>, vector<8x64xf32>,
    %c0_i32_92 = arith.constant 0 : i32
    %321 = arith.cmpi eq, %arg0, %c0_i32_92 : i32
    %322 = arith.extui %321 : i1 to i32
    %c0_i32_93 = arith.constant 0 : i32
    %323 = arith.cmpi ne, %322, %c0_i32_93 : i32
    scf.if %323 {
      %c0_94 = arith.constant 0 : index
      %c0_95 = arith.constant 0 : index
      %324 = vector.load %arg4[%c0_94, %c0_95] : memref<8x64xf32, #tpu.memory_space<vmem>>, vector<8x64xf32>
      tpu.vector_store %arg4[%c0_94, %c0_95], %319 {strides = array<i32>} : memref<8x64xf32, #tpu.memory_space<vmem>>, vector<8x64xf32>,
    } else {
    }
    return
  }
  func.func @transform_0(%arg0: i32) -> (i32, i32, i32, i32) {
    %c0_i32 = arith.constant 0 : i32
    %c0_i32_0 = arith.constant 0 : i32
    %c0_i32_1 = arith.constant 0 : i32
    %c0_i32_2 = arith.constant 0 : i32
    return %arg0, %c0_i32, %c0_i32_0, %c0_i32_1 : i32, i32, i32, i32
  }
  func.func @transform_1(%arg0: i32) -> (i32, i32, i32) {
    %c0_i32 = arith.constant 0 : i32
    %c0_i32_0 = arith.constant 0 : i32
    %c0_i32_1 = arith.constant 0 : i32
    %c0_i32_2 = arith.constant 0 : i32
    return %c0_i32, %c0_i32_0, %c0_i32_1 : i32, i32, i32
  }
  func.func @transform_2(%arg0: i32) -> (i32, i32, i32) {
    %c0_i32 = arith.constant 0 : i32
    %c0_i32_0 = arith.constant 0 : i32
    %c0_i32_1 = arith.constant 0 : i32
    %c0_i32_2 = arith.constant 0 : i32
    return %c0_i32, %c0_i32_0, %c0_i32_1 : i32, i32, i32
  }
  func.func @transform_3(%arg0: i32) -> (i32, i32) {
    %c0_i32 = arith.constant 0 : i32
    %c0_i32_0 = arith.constant 0 : i32
    %c0_i32_1 = arith.constant 0 : i32
    return %c0_i32, %c0_i32_0 : i32, i32
  }
}

</mosaic_0001>

<llo_original>
// kernel: tpu_custom_call.1
$region0: #{tpu_custom_call.1}
  #allocation0 [shape = 'u32[]', space=smem, size = 0x4, offset = 0x4, fixed_abs, tag = 'smem constant byte address 0x4 - core index']
  #allocation1 [shape = 'u32[72,128]{1,0:T(1,128)}', space=vmem, size = 0x9000, scoped, tag = 'internal scratch']
  #allocation2 [shape = 'f32[8,64]{1,0:T(8,128)}', space=vmem, size = 0x1000, scoped, tag = 'scratch operand']
  %s0 = inlined_call_operand.hbm [shape: f32[8,3,8,64], index: 0, kind: input, shape index: {}]
  %s1 = inlined_call_operand.hbm [shape: f32[3,64,64], index: 1, kind: input, shape index: {}]
  %s2 = inlined_call_operand.hbm [shape: f32[3,1,64], index: 2, kind: input, shape index: {}]
  %s3 = inlined_call_operand.hbm [shape: f32[8,64], index: 3, kind: output, shape index: {}]
  %s4 = sld [smem:[#allocation0]]
  $region42: #{tpu_custom_call.1} parent=0
    _
  %s6 = ssub.s32 1, %s4
  %s7 = scalar_select 0, %s6, %s4
  $region1: #{tpu_custom_call.1} parent=0
    #allocation3 [shape = 'u8[98304]{0}', space=vmem, size = 0x18000, scoped, tag = 'input window, operand 0, single buffered']
    #allocation4 [shape = 's32[1]{0}', space=sflag, size = 0x4, scoped, tag = 'scoped memory for tpu_custom_call.1']
    #allocation5 [shape = 's32[1]{0}', space=sflag, size = 0x4, scoped, tag = 'scoped memory for tpu_custom_call.1']
    #allocation6 [shape = 'u8[98304]{0}', space=vmem, size = 0x18000, scoped, tag = 'input window, operand 1, single buffered']
    #allocation7 [shape = 's32[1]{0}', space=sflag, size = 0x4, scoped, tag = 'scoped memory for tpu_custom_call.1']
    #allocation8 [shape = 'u8[1536]{0}', space=vmem, size = 0x800, scoped, tag = 'input window, operand 2, single buffered']
    #allocation9 [shape = 'u8[4096]{0}', space=vmem, size = 0x1000, scoped, tag = 'output window, operand 0, single buffered']
    %8 = vsyncpa [#allocation4], 0
    %9 = vsyncpa [#allocation7], 0
    %10 = vsyncpa [#allocation5], 0
    // Predicated region
    $region2: #{tpu_custom_call.1} parent=1 // pred_check
      _
    $region3: #{tpu_custom_call.1} parent=1 // pred_check_branch
      %12 = sbr.rel (0) target = $region5
    $region4: #{tpu_custom_call.1} parent=1 // pred_region
      %14 = vsyncadd [#allocation4], 0
      %s15 = sshll.u32 %s0, 4
      %s16 = int_to_ptr.hbm [resolvable:$true] %s15
      %s17 = sshll.u32 [#allocation3], 4
      %s18 = int_to_ptr.vmem [resolvable:$true] %s17
      %23 = dma.hbm_to_vmem [thread:$0]  %s16, 3072, %s18, [#allocation4], 128, 128, 8
    $region5: #{tpu_custom_call.1} parent=1 // pred_fallthru
      _
    // Predicated region
    $region6: #{tpu_custom_call.1} parent=1 // pred_check
      _
    $region7: #{tpu_custom_call.1} parent=1 // pred_check_branch
      %25 = sbr.rel (0) target = $region9
    $region8: #{tpu_custom_call.1} parent=1 // pred_region
      %27 = vsyncadd [#allocation7], 0
      %s28 = sshll.u32 %s1, 4
      %s29 = int_to_ptr.hbm [resolvable:$true] %s28
      %s30 = sshll.u32 [#allocation6], 4
      %s31 = int_to_ptr.vmem [resolvable:$true] %s30
      %36 = dma.hbm_to_vmem [thread:$0]  %s29, 3072, %s31, [#allocation7], 128, 128, 8
    $region9: #{tpu_custom_call.1} parent=1 // pred_fallthru
      _
    // Predicated region
    $region10: #{tpu_custom_call.1} parent=1 // pred_check
      _
    $region11: #{tpu_custom_call.1} parent=1 // pred_check_branch
      %38 = sbr.rel (0) target = $region13
    $region12: #{tpu_custom_call.1} parent=1 // pred_region
      %40 = vsyncadd [#allocation7], 0
      %s41 = sshll.u32 %s2, 4
      %s42 = int_to_ptr.hbm [resolvable:$true] %s41
      %s43 = sshll.u32 [#allocation8], 4
      %s44 = int_to_ptr.vmem [resolvable:$true] %s43
      %49 = dma.hbm_to_vmem [thread:$0]  %s42, 48, %s44, [#allocation7], 16, 16, 1
    $region13: #{tpu_custom_call.1} parent=1 // pred_fallthru
      _
    // Predicated region
    $region14: #{tpu_custom_call.1} parent=1 // pred_check
      _
    $region15: #{tpu_custom_call.1} parent=1 // pred_check_branch
      %51 = sbr.rel (0) target = $region17
    $region16: #{tpu_custom_call.1} parent=1 // pred_region
      %53 = dma.done [#allocation4], 3072
    $region17: #{tpu_custom_call.1} parent=1 // pred_fallthru
      _
    // Predicated region
    $region18: #{tpu_custom_call.1} parent=1 // pred_check
      _
    $region19: #{tpu_custom_call.1} parent=1 // pred_check_branch
      %55 = sbr.rel (0) target = $region21
    $region20: #{tpu_custom_call.1} parent=1 // pred_region
      %57 = dma.done [#allocation7], 3072
    $region21: #{tpu_custom_call.1} parent=1 // pred_fallthru
      _
    // Predicated region
    $region22: #{tpu_custom_call.1} parent=1 // pred_check
      _
    $region23: #{tpu_custom_call.1} parent=1 // pred_check_branch
      %59 = sbr.rel (0) target = $region25
    $region24: #{tpu_custom_call.1} parent=1 // pred_region
      %61 = dma.done [#allocation7], 48
    $region25: #{tpu_custom_call.1} parent=1 // pred_fallthru
      _
    %p62 = scmp.eq.s32.totalorder 0, 0
    // Predicated region
    $region26: #{tpu_custom_call.1} parent=1 // pred_check
      %p63 = pneg %p62
    $region27: #{tpu_custom_call.1} parent=1 // pred_check_branch
      %65 = sbr.rel (%p63) target = $region29
    $region28: #{tpu_custom_call.1} parent=1 // pred_region
      %vm66 = vcmask 523264
      %67 = vst.msk [vmem:[#allocation2] sm:$0xff] %vm66, 0.0
    $region29: #{tpu_custom_call.1} parent=1 // pred_fallthru
      _
    %v68 = vld [vmem:[#allocation6] sm:$0xff]
    %v69 = vld [vmem:[#allocation6 + $0x8] sm:$0xff]
    %v70 = vld [vmem:[#allocation6 + $0x10] sm:$0xff]
    %v71 = vld [vmem:[#allocation6 + $0x18] sm:$0xff]
    %v72 = vld [vmem:[#allocation6 + $0x20] sm:$0xff]
    %v73 = vld [vmem:[#allocation6 + $0x28] sm:$0xff]
    %v74 = vld [vmem:[#allocation6 + $0x30] sm:$0xff]
    %v75 = vld [vmem:[#allocation6 + $0x38] sm:$0xff]
    %s76 = scalar_lea.vmem [#allocation6], 64
    %v77 = vld [vmem:[%s76] sm:$0xff]
    %v78 = vld [vmem:[%s76 + $0x8] sm:$0xff]
    %v79 = vld [vmem:[%s76 + $0x10] sm:$0xff]
    %v80 = vld [vmem:[%s76 + $0x18] sm:$0xff]
    %v81 = vld [vmem:[%s76 + $0x20] sm:$0xff]
    %v82 = vld [vmem:[%s76 + $0x28] sm:$0xff]
    %v83 = vld [vmem:[%s76 + $0x30] sm:$0xff]
    %v84 = vld [vmem:[%s76 + $0x38] sm:$0xff]
    %s85 = scalar_lea.vmem [#allocation6], 128
    %v86 = vld [vmem:[%s85] sm:$0xff]
    %v87 = vld [vmem:[%s85 + $0x8] sm:$0xff]
    %v88 = vld [vmem:[%s85 + $0x10] sm:$0xff]
    %v89 = vld [vmem:[%s85 + $0x18] sm:$0xff]
    %v90 = vld [vmem:[%s85 + $0x20] sm:$0xff]
    %v91 = vld [vmem:[%s85 + $0x28] sm:$0xff]
    %v92 = vld [vmem:[%s85 + $0x30] sm:$0xff]
    %v93 = vld [vmem:[%s85 + $0x38] sm:$0xff]
    %v94 = vld [vmem:[#allocation8] sm:$0x1]
    %s95 = scalar_lea.vmem [#allocation8], 1
    %v96 = vld [vmem:[%s95] sm:$0x1]
    %s97 = scalar_lea.vmem [#allocation8], 2
    %v98 = vld [vmem:[%s97] sm:$0x1]
    %v99 = vld [vmem:[#allocation2] sm:$0xff]
    %v100 = vld [vmem:[#allocation3] sm:$0xff]
    %v101 = vld [vmem:[#allocation3 + $0x8] sm:$0xff]
    %v102 = vld [vmem:[#allocation3 + $0x10] sm:$0xff]
    %v104 = vperm.slane %v94, 0
    %vm106 = vcmask 523264
    %v108 = vsel %vm106, %v99, 0
    %110 = vmatpush.msra.mxu0 0.0
    %111 = vmatpush.msra.mxu0 0.0
    %112 = vmatpush.msra.mxu0 0.0
    %113 = vmatpush.msra.mxu0 0.0
    %114 = vmatpush.msra.mxu0 0.0
    %115 = vmatpush.msra.mxu0 0.0
    %116 = vmatpush.msra.mxu0 0.0
    %117 = vmatpush.msra.mxu0 0.0
    %118 = vmatpush.msra.mxu0 %v75
    %119 = vmatpush.msra.mxu0 %v74
    %120 = vmatpush.msra.mxu0 %v73
    %121 = vmatpush.msra.mxu0 %v72
    %122 = vmatpush.msra.mxu0 %v71
    %123 = vmatpush.msra.mxu0 %v70
    %124 = vmatpush.msra.mxu0 %v69
    %125 = vmatpush.msra.mxu0 %v68
    %126 = vmatmul.f32.gmra.mxu0 %v108
    %v127 = vpop.f32.mrf.mxu0
    %v128 = vadd.f32 %v104, %v127
    %129 = vdwg.mxu0
    %v131 = vperm.slane %v96, 0
    %133 = vmatpush.msra.mxu0 0.0
    %134 = vmatpush.msra.mxu0 0.0
    %135 = vmatpush.msra.mxu0 0.0
    %136 = vmatpush.msra.mxu0 0.0
    %137 = vmatpush.msra.mxu0 0.0
    %138 = vmatpush.msra.mxu0 0.0
    %139 = vmatpush.msra.mxu0 0.0
    %140 = vmatpush.msra.mxu0 0.0
    %141 = vmatpush.msra.mxu0 %v84
    %142 = vmatpush.msra.mxu0 %v83
    %143 = vmatpush.msra.mxu0 %v82
    %144 = vmatpush.msra.mxu0 %v81
    %145 = vmatpush.msra.mxu0 %v80
    %146 = vmatpush.msra.mxu0 %v79
    %147 = vmatpush.msra.mxu0 %v78
    %148 = vmatpush.msra.mxu0 %v77
    %149 = vmatmul.f32.gmra.mxu0 %v108
    %v150 = vpop.f32.mrf.mxu0
    %v151 = vadd.f32 %v131, %v150
    %152 = vdwg.mxu0
    %v154 = vperm.slane %v98, 0
    %156 = vmatpush.msra.mxu0 0.0
    %157 = vmatpush.msra.mxu0 0.0
    %158 = vmatpush.msra.mxu0 0.0
    %159 = vmatpush.msra.mxu0 0.0
    %160 = vmatpush.msra.mxu0 0.0
    %161 = vmatpush.msra.mxu0 0.0
    %162 = vmatpush.msra.mxu0 0.0
    %163 = vmatpush.msra.mxu0 0.0
    %164 = vmatpush.msra.mxu0 %v93
    %165 = vmatpush.msra.mxu0 %v92
    %166 = vmatpush.msra.mxu0 %v91
    %167 = vmatpush.msra.mxu0 %v90
    %168 = vmatpush.msra.mxu0 %v89
    %169 = vmatpush.msra.mxu0 %v88
    %170 = vmatpush.msra.mxu0 %v87
    %171 = vmatpush.msra.mxu0 %v86
    %172 = vmatmul.f32.gmra.mxu0 %v108
    %v173 = vpop.f32.mrf.mxu0
    %v174 = vadd.f32 %v154, %v173
    %175 = vdwg.mxu0
    %v176 = vadd.f32 %v100, %v128
    %v177 = vxor.u32 %v176, 2147483648
    %v178 = vmul.f32 %v177, 1.442695
    %v179 = vpow.pop %v178
    %v180 = vadd.f32 %v179, 1.0
    %v181 = vrcp.pop %v180
    %v182 = vmul.f32 %v180, %v181
    %v183 = vsub.f32 1.0, %v182
    %v184 = vmul.f32 %v181, %v183
    %v185 = vadd.f32 %v181, %v184
    %vm186 = vweird.f32 %v180
    %vm187 = vweird.f32 %v181
    %vm188 = vmor %vm186, %vm187
    %v189 = vsel %vm188, %v181, %v185
    %v190 = vand.u32 2147483647, %v180
    %vm191 = vcmp.eq.f32.partialorder %v190, 8.507059e+37
    %v192 = vand.u32 %v180, 2147483648
    %v193 = vor.u32 1.1754944e-38, %v192
    %v194 = vsel %vm191, %v193, %v189
    %v195 = vmul.f32 1.0, %v194
    %v196 = vadd.f32 %v101, %v151
    %v197 = vxor.u32 %v196, 2147483648
    %v198 = vmul.f32 %v197, 1.442695
    %v199 = vpow.pop %v198
    %v200 = vadd.f32 %v199, 1.0
    %v201 = vrcp.pop %v200
    %v202 = vmul.f32 %v200, %v201
    %v203 = vsub.f32 1.0, %v202
    %v204 = vmul.f32 %v201, %v203
    %v205 = vadd.f32 %v201, %v204
    %vm206 = vweird.f32 %v200
    %vm207 = vweird.f32 %v201
    %vm208 = vmor %vm206, %vm207
    %v209 = vsel %vm208, %v201, %v205
    %v210 = vand.u32 2147483647, %v200
    %vm211 = vcmp.eq.f32.partialorder %v210, 8.507059e+37
    %v212 = vand.u32 %v200, 2147483648
    %v213 = vor.u32 1.1754944e-38, %v212
    %v214 = vsel %vm211, %v213, %v209
    %v215 = vmul.f32 1.0, %v214
    %v216 = vmul.f32 %v195, %v174
    %v217 = vadd.f32 %v102, %v216
    %v218 = vtanh.pop %v217
    %v219 = vsub.f32 1.0, %v215
    %v220 = vmul.f32 %v219, %v218
    %v221 = vmul.f32 %v215, %v99
    %v222 = vadd.f32 %v220, %v221
    %s223 = scalar_lea.vmem [#allocation3], 24
    %v224 = vld [vmem:[%s223] sm:$0xff]
    %v225 = vld [vmem:[%s223 + $0x8] sm:$0xff]
    %v226 = vld [vmem:[%s223 + $0x10] sm:$0xff]
    %v228 = vsel %vm106, %v222, 0
    %230 = vmatpush.msra.mxu0 0.0
    %231 = vmatpush.msra.mxu0 0.0
    %232 = vmatpush.msra.mxu0 0.0
    %233 = vmatpush.msra.mxu0 0.0
    %234 = vmatpush.msra.mxu0 0.0
    %235 = vmatpush.msra.mxu0 0.0
    %236 = vmatpush.msra.mxu0 0.0
    %237 = vmatpush.msra.mxu0 0.0
    %238 = vmatpush.msra.mxu0 %v75
    %239 = vmatpush.msra.mxu0 %v74
    %240 = vmatpush.msra.mxu0 %v73
    %241 = vmatpush.msra.mxu0 %v72
    %242 = vmatpush.msra.mxu0 %v71
    %243 = vmatpush.msra.mxu0 %v70
    %244 = vmatpush.msra.mxu0 %v69
    %245 = vmatpush.msra.mxu0 %v68
    %246 = vmatmul.f32.gmra.mxu0 %v228
    %v247 = vpop.f32.mrf.mxu0
    %v248 = vadd.f32 %v104, %v247
    %249 = vdwg.mxu0
    %250 = vmatpush.msra.mxu0 0.0
    %251 = vmatpush.msra.mxu0 0.0
    %252 = vmatpush.msra.mxu0 0.0
    %253 = vmatpush.msra.mxu0 0.0
    %254 = vmatpush.msra.mxu0 0.0
    %255 = vmatpush.msra.mxu0 0.0
    %256 = vmatpush.msra.mxu0 0.0
    %257 = vmatpush.msra.mxu0 0.0
    %258 = vmatpush.msra.mxu0 %v84
    %259 = vmatpush.msra.mxu0 %v83
    %260 = vmatpush.msra.mxu0 %v82
    %261 = vmatpush.msra.mxu0 %v81
    %262 = vmatpush.msra.mxu0 %v80
    %263 = vmatpush.msra.mxu0 %v79
    %264 = vmatpush.msra.mxu0 %v78
    %265 = vmatpush.msra.mxu0 %v77
    %266 = vmatmul.f32.gmra.mxu0 %v228
    %v267 = vpop.f32.mrf.mxu0
    %v268 = vadd.f32 %v131, %v267
    %269 = vdwg.mxu0
    %270 = vmatpush.msra.mxu0 0.0
    %271 = vmatpush.msra.mxu0 0.0
    %272 = vmatpush.msra.mxu0 0.0
    %273 = vmatpush.msra.mxu0 0.0
    %274 = vmatpush.msra.mxu0 0.0
    %275 = vmatpush.msra.mxu0 0.0
    %276 = vmatpush.msra.mxu0 0.0
    %277 = vmatpush.msra.mxu0 0.0
    %278 = vmatpush.msra.mxu0 %v93
    %279 = vmatpush.msra.mxu0 %v92
    %280 = vmatpush.msra.mxu0 %v91
    %281 = vmatpush.msra.mxu0 %v90
    %282 = vmatpush.msra.mxu0 %v89
    %283 = vmatpush.msra.mxu0 %v88
    %284 = vmatpush.msra.mxu0 %v87
    %285 = vmatpush.msra.mxu0 %v86
    %286 = vmatmul.f32.gmra.mxu0 %v228
    %v287 = vpop.f32.mrf.mxu0
    %v288 = vadd.f32 %v154, %v287
    %289 = vdwg.mxu0
    %v290 = vadd.f32 %v224, %v248
    %v291 = vxor.u32 %v290, 2147483648
    %v292 = vmul.f32 %v291, 1.442695
    %v293 = vpow.pop %v292
    %v294 = vadd.f32 %v293, 1.0
    %v295 = vrcp.pop %v294
    %v296 = vmul.f32 %v294, %v295
    %v297 = vsub.f32 1.0, %v296
    %v298 = vmul.f32 %v295, %v297
    %v299 = vadd.f32 %v295, %v298
    %vm300 = vweird.f32 %v294
    %vm301 = vweird.f32 %v295
    %vm302 = vmor %vm300, %vm301
    %v303 = vsel %vm302, %v295, %v299
    %v304 = vand.u32 2147483647, %v294
    %vm305 = vcmp.eq.f32.partialorder %v304, 8.507059e+37
    %v306 = vand.u32 %v294, 2147483648
    %v307 = vor.u32 1.1754944e-38, %v306
    %v308 = vsel %vm305, %v307, %v303
    %v309 = vmul.f32 1.0, %v308
    %v310 = vadd.f32 %v225, %v268
    %v311 = vxor.u32 %v310, 2147483648
    %v312 = vmul.f32 %v311, 1.442695
    %v313 = vpow.pop %v312
    %v314 = vadd.f32 %v313, 1.0
    %v315 = vrcp.pop %v314
    %v316 = vmul.f32 %v314, %v315
    %v317 = vsub.f32 1.0, %v316
    %v318 = vmul.f32 %v315, %v317
    %v319 = vadd.f32 %v315, %v318
    %vm320 = vweird.f32 %v314
    %vm321 = vweird.f32 %v315
    %vm322 = vmor %vm320, %vm321
    %v323 = vsel %vm322, %v315, %v319
    %v324 = vand.u32 2147483647, %v314
    %vm325 = vcmp.eq.f32.partialorder %v324, 8.507059e+37
    %v326 = vand.u32 %v314, 2147483648
    %v327 = vor.u32 1.1754944e-38, %v326
    %v328 = vsel %vm325, %v327, %v323
    %v329 = vmul.f32 1.0, %v328
    %v330 = vmul.f32 %v309, %v288
    %v331 = vadd.f32 %v226, %v330
    %v332 = vtanh.pop %v331
    %v333 = vsub.f32 1.0, %v329
    %v334 = vmul.f32 %v333, %v332
    %v335 = vmul.f32 %v329, %v222
    %v336 = vadd.f32 %v334, %v335
    %s337 = scalar_lea.vmem [#allocation3], 48
    %v338 = vld [vmem:[%s337] sm:$0xff]
    %v339 = vld [vmem:[%s337 + $0x8] sm:$0xff]
    %v340 = vld [vmem:[%s337 + $0x10] sm:$0xff]
    %v342 = vsel %vm106, %v336, 0
    %344 = vmatpush.msra.mxu0 0.0
    %345 = vmatpush.msra.mxu0 0.0
    %346 = vmatpush.msra.mxu0 0.0
    %347 = vmatpush.msra.mxu0 0.0
    %348 = vmatpush.msra.mxu0 0.0
    %349 = vmatpush.msra.mxu0 0.0
    %350 = vmatpush.msra.mxu0 0.0
    %351 = vmatpush.msra.mxu0 0.0
    %352 = vmatpush.msra.mxu0 %v75
    %353 = vmatpush.msra.mxu0 %v74
    %354 = vmatpush.msra.mxu0 %v73
    %355 = vmatpush.msra.mxu0 %v72
    %356 = vmatpush.msra.mxu0 %v71
    %357 = vmatpush.msra.mxu0 %v70
    %358 = vmatpush.msra.mxu0 %v69
    %359 = vmatpush.msra.mxu0 %v68
    %360 = vmatmul.f32.gmra.mxu0 %v342
    %v361 = vpop.f32.mrf.mxu0
    %v362 = vadd.f32 %v104, %v361
    %363 = vdwg.mxu0
    %364 = vmatpush.msra.mxu0 0.0
    %365 = vmatpush.msra.mxu0 0.0
    %366 = vmatpush.msra.mxu0 0.0
    %367 = vmatpush.msra.mxu0 0.0
    %368 = vmatpush.msra.mxu0 0.0
    %369 = vmatpush.msra.mxu0 0.0
    %370 = vmatpush.msra.mxu0 0.0
    %371 = vmatpush.msra.mxu0 0.0
    %372 = vmatpush.msra.mxu0 %v84
    %373 = vmatpush.msra.mxu0 %v83
    %374 = vmatpush.msra.mxu0 %v82
    %375 = vmatpush.msra.mxu0 %v81
    %376 = vmatpush.msra.mxu0 %v80
    %377 = vmatpush.msra.mxu0 %v79
    %378 = vmatpush.msra.mxu0 %v78
    %379 = vmatpush.msra.mxu0 %v77
    %380 = vmatmul.f32.gmra.mxu0 %v342
    %v381 = vpop.f32.mrf.mxu0
    %v382 = vadd.f32 %v131, %v381
    %383 = vdwg.mxu0
    %384 = vmatpush.msra.mxu0 0.0
    %385 = vmatpush.msra.mxu0 0.0
    %386 = vmatpush.msra.mxu0 0.0
    %387 = vmatpush.msra.mxu0 0.0
    %388 = vmatpush.msra.mxu0 0.0
    %389 = vmatpush.msra.mxu0 0.0
    %390 = vmatpush.msra.mxu0 0.0
    %391 = vmatpush.msra.mxu0 0.0
    %392 = vmatpush.msra.mxu0 %v93
    %393 = vmatpush.msra.mxu0 %v92
    %394 = vmatpush.msra.mxu0 %v91
    %395 = vmatpush.msra.mxu0 %v90
    %396 = vmatpush.msra.mxu0 %v89
    %397 = vmatpush.msra.mxu0 %v88
    %398 = vmatpush.msra.mxu0 %v87
    %399 = vmatpush.msra.mxu0 %v86
    %400 = vmatmul.f32.gmra.mxu0 %v342
    %v401 = vpop.f32.mrf.mxu0
    %v402 = vadd.f32 %v154, %v401
    %403 = vdwg.mxu0
    %v404 = vadd.f32 %v338, %v362
    %v405 = vxor.u32 %v404, 2147483648
    %v406 = vmul.f32 %v405, 1.442695
    %v407 = vpow.pop %v406
    %v408 = vadd.f32 %v407, 1.0
    %v409 = vrcp.pop %v408
    %v410 = vmul.f32 %v408, %v409
    %v411 = vsub.f32 1.0, %v410
    %v412 = vmul.f32 %v409, %v411
    %v413 = vadd.f32 %v409, %v412
    %vm414 = vweird.f32 %v408
    %vm415 = vweird.f32 %v409
    %vm416 = vmor %vm414, %vm415
    %v417 = vsel %vm416, %v409, %v413
    %v418 = vand.u32 2147483647, %v408
    %vm419 = vcmp.eq.f32.partialorder %v418, 8.507059e+37
    %v420 = vand.u32 %v408, 2147483648
    %v421 = vor.u32 1.1754944e-38, %v420
    %v422 = vsel %vm419, %v421, %v417
    %v423 = vmul.f32 1.0, %v422
    %v424 = vadd.f32 %v339, %v382
    %v425 = vxor.u32 %v424, 2147483648
    %v426 = vmul.f32 %v425, 1.442695
    %v427 = vpow.pop %v426
    %v428 = vadd.f32 %v427, 1.0
    %v429 = vrcp.pop %v428
    %v430 = vmul.f32 %v428, %v429
    %v431 = vsub.f32 1.0, %v430
    %v432 = vmul.f32 %v429, %v431
    %v433 = vadd.f32 %v429, %v432
    %vm434 = vweird.f32 %v428
    %vm435 = vweird.f32 %v429
    %vm436 = vmor %vm434, %vm435
    %v437 = vsel %vm436, %v429, %v433
    %v438 = vand.u32 2147483647, %v428
    %vm439 = vcmp.eq.f32.partialorder %v438, 8.507059e+37
    %v440 = vand.u32 %v428, 2147483648
    %v441 = vor.u32 1.1754944e-38, %v440
    %v442 = vsel %vm439, %v441, %v437
    %v443 = vmul.f32 1.0, %v442
    %v444 = vmul.f32 %v423, %v402
    %v445 = vadd.f32 %v340, %v444
    %v446 = vtanh.pop %v445
    %v447 = vsub.f32 1.0, %v443
    %v448 = vmul.f32 %v447, %v446
    %v449 = vmul.f32 %v443, %v336
    %v450 = vadd.f32 %v448, %v449
    %s451 = scalar_lea.vmem [#allocation3], 72
    %v452 = vld [vmem:[%s451] sm:$0xff]
    %v453 = vld [vmem:[%s451 + $0x8] sm:$0xff]
    %v454 = vld [vmem:[%s451 + $0x10] sm:$0xff]
    %v456 = vsel %vm106, %v450, 0
    %458 = vmatpush.msra.mxu0 0.0
    %459 = vmatpush.msra.mxu0 0.0
    %460 = vmatpush.msra.mxu0 0.0
    %461 = vmatpush.msra.mxu0 0.0
    %462 = vmatpush.msra.mxu0 0.0
    %463 = vmatpush.msra.mxu0 0.0
    %464 = vmatpush.msra.mxu0 0.0
    %465 = vmatpush.msra.mxu0 0.0
    %466 = vmatpush.msra.mxu0 %v75
    %467 = vmatpush.msra.mxu0 %v74
    %468 = vmatpush.msra.mxu0 %v73
    %469 = vmatpush.msra.mxu0 %v72
    %470 = vmatpush.msra.mxu0 %v71
    %471 = vmatpush.msra.mxu0 %v70
    %472 = vmatpush.msra.mxu0 %v69
    %473 = vmatpush.msra.mxu0 %v68
    %474 = vmatmul.f32.gmra.mxu0 %v456
    %v475 = vpop.f32.mrf.mxu0
    %v476 = vadd.f32 %v104, %v475
    %477 = vdwg.mxu0
    %478 = vmatpush.msra.mxu0 0.0
    %479 = vmatpush.msra.mxu0 0.0
    %480 = vmatpush.msra.mxu0 0.0
    %481 = vmatpush.msra.mxu0 0.0
    %482 = vmatpush.msra.mxu0 0.0
    %483 = vmatpush.msra.mxu0 0.0
    %484 = vmatpush.msra.mxu0 0.0
    %485 = vmatpush.msra.mxu0 0.0
    %486 = vmatpush.msra.mxu0 %v84
    %487 = vmatpush.msra.mxu0 %v83
    %488 = vmatpush.msra.mxu0 %v82
    %489 = vmatpush.msra.mxu0 %v81
    %490 = vmatpush.msra.mxu0 %v80
    %491 = vmatpush.msra.mxu0 %v79
    %492 = vmatpush.msra.mxu0 %v78
    %493 = vmatpush.msra.mxu0 %v77
    %494 = vmatmul.f32.gmra.mxu0 %v456
    %v495 = vpop.f32.mrf.mxu0
    %v496 = vadd.f32 %v131, %v495
    %497 = vdwg.mxu0
    %498 = vmatpush.msra.mxu0 0.0
    %499 = vmatpush.msra.mxu0 0.0
    %500 = vmatpush.msra.mxu0 0.0
    %501 = vmatpush.msra.mxu0 0.0
    %502 = vmatpush.msra.mxu0 0.0
    %503 = vmatpush.msra.mxu0 0.0
    %504 = vmatpush.msra.mxu0 0.0
    %505 = vmatpush.msra.mxu0 0.0
    %506 = vmatpush.msra.mxu0 %v93
    %507 = vmatpush.msra.mxu0 %v92
    %508 = vmatpush.msra.mxu0 %v91
    %509 = vmatpush.msra.mxu0 %v90
    %510 = vmatpush.msra.mxu0 %v89
    %511 = vmatpush.msra.mxu0 %v88
    %512 = vmatpush.msra.mxu0 %v87
    %513 = vmatpush.msra.mxu0 %v86
    %514 = vmatmul.f32.gmra.mxu0 %v456
    %v515 = vpop.f32.mrf.mxu0
    %v516 = vadd.f32 %v154, %v515
    %517 = vdwg.mxu0
    %v518 = vadd.f32 %v452, %v476
    %v519 = vxor.u32 %v518, 2147483648
    %v520 = vmul.f32 %v519, 1.442695
    %v521 = vpow.pop %v520
    %v522 = vadd.f32 %v521, 1.0
    %v523 = vrcp.pop %v522
    %v524 = vmul.f32 %v522, %v523
    %v525 = vsub.f32 1.0, %v524
    %v526 = vmul.f32 %v523, %v525
    %v527 = vadd.f32 %v523, %v526
    %vm528 = vweird.f32 %v522
    %vm529 = vweird.f32 %v523
    %vm530 = vmor %vm528, %vm529
    %v531 = vsel %vm530, %v523, %v527
    %v532 = vand.u32 2147483647, %v522
    %vm533 = vcmp.eq.f32.partialorder %v532, 8.507059e+37
    %v534 = vand.u32 %v522, 2147483648
    %v535 = vor.u32 1.1754944e-38, %v534
    %v536 = vsel %vm533, %v535, %v531
    %v537 = vmul.f32 1.0, %v536
    %v538 = vadd.f32 %v453, %v496
    %v539 = vxor.u32 %v538, 2147483648
    %v540 = vmul.f32 %v539, 1.442695
    %v541 = vpow.pop %v540
    %v542 = vadd.f32 %v541, 1.0
    %v543 = vrcp.pop %v542
    %v544 = vmul.f32 %v542, %v543
    %v545 = vsub.f32 1.0, %v544
    %v546 = vmul.f32 %v543, %v545
    %v547 = vadd.f32 %v543, %v546
    %vm548 = vweird.f32 %v542
    %vm549 = vweird.f32 %v543
    %vm550 = vmor %vm548, %vm549
    %v551 = vsel %vm550, %v543, %v547
    %v552 = vand.u32 2147483647, %v542
    %vm553 = vcmp.eq.f32.partialorder %v552, 8.507059e+37
    %v554 = vand.u32 %v542, 2147483648
    %v555 = vor.u32 1.1754944e-38, %v554
    %v556 = vsel %vm553, %v555, %v551
    %v557 = vmul.f32 1.0, %v556
    %v558 = vmul.f32 %v537, %v516
    %v559 = vadd.f32 %v454, %v558
    %v560 = vtanh.pop %v559
    %v561 = vsub.f32 1.0, %v557
    %v562 = vmul.f32 %v561, %v560
    %v563 = vmul.f32 %v557, %v450
    %v564 = vadd.f32 %v562, %v563
    %s565 = scalar_lea.vmem [#allocation3], 96
    %v566 = vld [vmem:[%s565] sm:$0xff]
    %v567 = vld [vmem:[%s565 + $0x8] sm:$0xff]
    %v568 = vld [vmem:[%s565 + $0x10] sm:$0xff]
    %v570 = vsel %vm106, %v564, 0
    %572 = vmatpush.msra.mxu0 0.0
    %573 = vmatpush.msra.mxu0 0.0
    %574 = vmatpush.msra.mxu0 0.0
    %575 = vmatpush.msra.mxu0 0.0
    %576 = vmatpush.msra.mxu0 0.0
    %577 = vmatpush.msra.mxu0 0.0
    %578 = vmatpush.msra.mxu0 0.0
    %579 = vmatpush.msra.mxu0 0.0
    %580 = vmatpush.msra.mxu0 %v75
    %581 = vmatpush.msra.mxu0 %v74
    %582 = vmatpush.msra.mxu0 %v73
    %583 = vmatpush.msra.mxu0 %v72
    %584 = vmatpush.msra.mxu0 %v71
    %585 = vmatpush.msra.mxu0 %v70
    %586 = vmatpush.msra.mxu0 %v69
    %587 = vmatpush.msra.mxu0 %v68
    %588 = vmatmul.f32.gmra.mxu0 %v570
    %v589 = vpop.f32.mrf.mxu0
    %v590 = vadd.f32 %v104, %v589
    %591 = vdwg.mxu0
    %592 = vmatpush.msra.mxu0 0.0
    %593 = vmatpush.msra.mxu0 0.0
    %594 = vmatpush.msra.mxu0 0.0
    %595 = vmatpush.msra.mxu0 0.0
    %596 = vmatpush.msra.mxu0 0.0
    %597 = vmatpush.msra.mxu0 0.0
    %598 = vmatpush.msra.mxu0 0.0
    %599 = vmatpush.msra.mxu0 0.0
    %600 = vmatpush.msra.mxu0 %v84
    %601 = vmatpush.msra.mxu0 %v83
    %602 = vmatpush.msra.mxu0 %v82
    %603 = vmatpush.msra.mxu0 %v81
    %604 = vmatpush.msra.mxu0 %v80
    %605 = vmatpush.msra.mxu0 %v79
    %606 = vmatpush.msra.mxu0 %v78
    %607 = vmatpush.msra.mxu0 %v77
    %608 = vmatmul.f32.gmra.mxu0 %v570
    %v609 = vpop.f32.mrf.mxu0
    %v610 = vadd.f32 %v131, %v609
    %611 = vdwg.mxu0
    %612 = vmatpush.msra.mxu0 0.0
    %613 = vmatpush.msra.mxu0 0.0
    %614 = vmatpush.msra.mxu0 0.0
    %615 = vmatpush.msra.mxu0 0.0
    %616 = vmatpush.msra.mxu0 0.0
    %617 = vmatpush.msra.mxu0 0.0
    %618 = vmatpush.msra.mxu0 0.0
    %619 = vmatpush.msra.mxu0 0.0
    %620 = vmatpush.msra.mxu0 %v93
    %621 = vmatpush.msra.mxu0 %v92
    %622 = vmatpush.msra.mxu0 %v91
    %623 = vmatpush.msra.mxu0 %v90
    %624 = vmatpush.msra.mxu0 %v89
    %625 = vmatpush.msra.mxu0 %v88
    %626 = vmatpush.msra.mxu0 %v87
    %627 = vmatpush.msra.mxu0 %v86
    %628 = vmatmul.f32.gmra.mxu0 %v570
    %v629 = vpop.f32.mrf.mxu0
    %v630 = vadd.f32 %v154, %v629
    %631 = vdwg.mxu0
    %v632 = vadd.f32 %v566, %v590
    %v633 = vxor.u32 %v632, 2147483648
    %v634 = vmul.f32 %v633, 1.442695
    %v635 = vpow.pop %v634
    %v636 = vadd.f32 %v635, 1.0
    %v637 = vrcp.pop %v636
    %v638 = vmul.f32 %v636, %v637
    %v639 = vsub.f32 1.0, %v638
    %v640 = vmul.f32 %v637, %v639
    %v641 = vadd.f32 %v637, %v640
    %vm642 = vweird.f32 %v636
    %vm643 = vweird.f32 %v637
    %vm644 = vmor %vm642, %vm643
    %v645 = vsel %vm644, %v637, %v641
    %v646 = vand.u32 2147483647, %v636
    %vm647 = vcmp.eq.f32.partialorder %v646, 8.507059e+37
    %v648 = vand.u32 %v636, 2147483648
    %v649 = vor.u32 1.1754944e-38, %v648
    %v650 = vsel %vm647, %v649, %v645
    %v651 = vmul.f32 1.0, %v650
    %v652 = vadd.f32 %v567, %v610
    %v653 = vxor.u32 %v652, 2147483648
    %v654 = vmul.f32 %v653, 1.442695
    %v655 = vpow.pop %v654
    %v656 = vadd.f32 %v655, 1.0
    %v657 = vrcp.pop %v656
    %v658 = vmul.f32 %v656, %v657
    %v659 = vsub.f32 1.0, %v658
    %v660 = vmul.f32 %v657, %v659
    %v661 = vadd.f32 %v657, %v660
    %vm662 = vweird.f32 %v656
    %vm663 = vweird.f32 %v657
    %vm664 = vmor %vm662, %vm663
    %v665 = vsel %vm664, %v657, %v661
    %v666 = vand.u32 2147483647, %v656
    %vm667 = vcmp.eq.f32.partialorder %v666, 8.507059e+37
    %v668 = vand.u32 %v656, 2147483648
    %v669 = vor.u32 1.1754944e-38, %v668
    %v670 = vsel %vm667, %v669, %v665
    %v671 = vmul.f32 1.0, %v670
    %v672 = vmul.f32 %v651, %v630
    %v673 = vadd.f32 %v568, %v672
    %v674 = vtanh.pop %v673
    %v675 = vsub.f32 1.0, %v671
    %v676 = vmul.f32 %v675, %v674
    %v677 = vmul.f32 %v671, %v564
    %v678 = vadd.f32 %v676, %v677
    %s679 = scalar_lea.vmem [#allocation3], 120
    %v680 = vld [vmem:[%s679] sm:$0xff]
    %v681 = vld [vmem:[%s679 + $0x8] sm:$0xff]
    %v682 = vld [vmem:[%s679 + $0x10] sm:$0xff]
    %v684 = vsel %vm106, %v678, 0
    %686 = vmatpush.msra.mxu0 0.0
    %687 = vmatpush.msra.mxu0 0.0
    %688 = vmatpush.msra.mxu0 0.0
    %689 = vmatpush.msra.mxu0 0.0
    %690 = vmatpush.msra.mxu0 0.0
    %691 = vmatpush.msra.mxu0 0.0
    %692 = vmatpush.msra.mxu0 0.0
    %693 = vmatpush.msra.mxu0 0.0
    %694 = vmatpush.msra.mxu0 %v75
    %695 = vmatpush.msra.mxu0 %v74
    %696 = vmatpush.msra.mxu0 %v73
    %697 = vmatpush.msra.mxu0 %v72
    %698 = vmatpush.msra.mxu0 %v71
    %699 = vmatpush.msra.mxu0 %v70
    %700 = vmatpush.msra.mxu0 %v69
    %701 = vmatpush.msra.mxu0 %v68
    %702 = vmatmul.f32.gmra.mxu0 %v684
    %v703 = vpop.f32.mrf.mxu0
    %v704 = vadd.f32 %v104, %v703
    %705 = vdwg.mxu0
    %706 = vmatpush.msra.mxu0 0.0
    %707 = vmatpush.msra.mxu0 0.0
    %708 = vmatpush.msra.mxu0 0.0
    %709 = vmatpush.msra.mxu0 0.0
    %710 = vmatpush.msra.mxu0 0.0
    %711 = vmatpush.msra.mxu0 0.0
    %712 = vmatpush.msra.mxu0 0.0
    %713 = vmatpush.msra.mxu0 0.0
    %714 = vmatpush.msra.mxu0 %v84
    %715 = vmatpush.msra.mxu0 %v83
    %716 = vmatpush.msra.mxu0 %v82
    %717 = vmatpush.msra.mxu0 %v81
    %718 = vmatpush.msra.mxu0 %v80
    %719 = vmatpush.msra.mxu0 %v79
    %720 = vmatpush.msra.mxu0 %v78
    %721 = vmatpush.msra.mxu0 %v77
    %722 = vmatmul.f32.gmra.mxu0 %v684
    %v723 = vpop.f32.mrf.mxu0
    %v724 = vadd.f32 %v131, %v723
    %725 = vdwg.mxu0
    %726 = vmatpush.msra.mxu0 0.0
    %727 = vmatpush.msra.mxu0 0.0
    %728 = vmatpush.msra.mxu0 0.0
    %729 = vmatpush.msra.mxu0 0.0
    %730 = vmatpush.msra.mxu0 0.0
    %731 = vmatpush.msra.mxu0 0.0
    %732 = vmatpush.msra.mxu0 0.0
    %733 = vmatpush.msra.mxu0 0.0
    %734 = vmatpush.msra.mxu0 %v93
    %735 = vmatpush.msra.mxu0 %v92
    %736 = vmatpush.msra.mxu0 %v91
    %737 = vmatpush.msra.mxu0 %v90
    %738 = vmatpush.msra.mxu0 %v89
    %739 = vmatpush.msra.mxu0 %v88
    %740 = vmatpush.msra.mxu0 %v87
    %741 = vmatpush.msra.mxu0 %v86
    %742 = vmatmul.f32.gmra.mxu0 %v684
    %v743 = vpop.f32.mrf.mxu0
    %v744 = vadd.f32 %v154, %v743
    %745 = vdwg.mxu0
    %v746 = vadd.f32 %v680, %v704
    %v747 = vxor.u32 %v746, 2147483648
    %v748 = vmul.f32 %v747, 1.442695
    %v749 = vpow.pop %v748
    %v750 = vadd.f32 %v749, 1.0
    %v751 = vrcp.pop %v750
    %v752 = vmul.f32 %v750, %v751
    %v753 = vsub.f32 1.0, %v752
    %v754 = vmul.f32 %v751, %v753
    %v755 = vadd.f32 %v751, %v754
    %vm756 = vweird.f32 %v750
    %vm757 = vweird.f32 %v751
    %vm758 = vmor %vm756, %vm757
    %v759 = vsel %vm758, %v751, %v755
    %v760 = vand.u32 2147483647, %v750
    %vm761 = vcmp.eq.f32.partialorder %v760, 8.507059e+37
    %v762 = vand.u32 %v750, 2147483648
    %v763 = vor.u32 1.1754944e-38, %v762
    %v764 = vsel %vm761, %v763, %v759
    %v765 = vmul.f32 1.0, %v764
    %v766 = vadd.f32 %v681, %v724
    %v767 = vxor.u32 %v766, 2147483648
    %v768 = vmul.f32 %v767, 1.442695
    %v769 = vpow.pop %v768
    %v770 = vadd.f32 %v769, 1.0
    %v771 = vrcp.pop %v770
    %v772 = vmul.f32 %v770, %v771
    %v773 = vsub.f32 1.0, %v772
    %v774 = vmul.f32 %v771, %v773
    %v775 = vadd.f32 %v771, %v774
    %vm776 = vweird.f32 %v770
    %vm777 = vweird.f32 %v771
    %vm778 = vmor %vm776, %vm777
    %v779 = vsel %vm778, %v771, %v775
    %v780 = vand.u32 2147483647, %v770
    %vm781 = vcmp.eq.f32.partialorder %v780, 8.507059e+37
    %v782 = vand.u32 %v770, 2147483648
    %v783 = vor.u32 1.1754944e-38, %v782
    %v784 = vsel %vm781, %v783, %v779
    %v785 = vmul.f32 1.0, %v784
    %v786 = vmul.f32 %v765, %v744
    %v787 = vadd.f32 %v682, %v786
    %v788 = vtanh.pop %v787
    %v789 = vsub.f32 1.0, %v785
    %v790 = vmul.f32 %v789, %v788
    %v791 = vmul.f32 %v785, %v678
    %v792 = vadd.f32 %v790, %v791
    %s793 = scalar_lea.vmem [#allocation3], 144
    %v794 = vld [vmem:[%s793] sm:$0xff]
    %v795 = vld [vmem:[%s793 + $0x8] sm:$0xff]
    %v796 = vld [vmem:[%s793 + $0x10] sm:$0xff]
    %v798 = vsel %vm106, %v792, 0
    %800 = vmatpush.msra.mxu0 0.0
    %801 = vmatpush.msra.mxu0 0.0
    %802 = vmatpush.msra.mxu0 0.0
    %803 = vmatpush.msra.mxu0 0.0
    %804 = vmatpush.msra.mxu0 0.0
    %805 = vmatpush.msra.mxu0 0.0
    %806 = vmatpush.msra.mxu0 0.0
    %807 = vmatpush.msra.mxu0 0.0
    %808 = vmatpush.msra.mxu0 %v75
    %809 = vmatpush.msra.mxu0 %v74
    %810 = vmatpush.msra.mxu0 %v73
    %811 = vmatpush.msra.mxu0 %v72
    %812 = vmatpush.msra.mxu0 %v71
    %813 = vmatpush.msra.mxu0 %v70
    %814 = vmatpush.msra.mxu0 %v69
    %815 = vmatpush.msra.mxu0 %v68
    %816 = vmatmul.f32.gmra.mxu0 %v798
    %v817 = vpop.f32.mrf.mxu0
    %v818 = vadd.f32 %v104, %v817
    %819 = vdwg.mxu0
    %820 = vmatpush.msra.mxu0 0.0
    %821 = vmatpush.msra.mxu0 0.0
    %822 = vmatpush.msra.mxu0 0.0
    %823 = vmatpush.msra.mxu0 0.0
    %824 = vmatpush.msra.mxu0 0.0
    %825 = vmatpush.msra.mxu0 0.0
    %826 = vmatpush.msra.mxu0 0.0
    %827 = vmatpush.msra.mxu0 0.0
    %828 = vmatpush.msra.mxu0 %v84
    %829 = vmatpush.msra.mxu0 %v83
    %830 = vmatpush.msra.mxu0 %v82
    %831 = vmatpush.msra.mxu0 %v81
    %832 = vmatpush.msra.mxu0 %v80
    %833 = vmatpush.msra.mxu0 %v79
    %834 = vmatpush.msra.mxu0 %v78
    %835 = vmatpush.msra.mxu0 %v77
    %836 = vmatmul.f32.gmra.mxu0 %v798
    %v837 = vpop.f32.mrf.mxu0
    %v838 = vadd.f32 %v131, %v837
    %839 = vdwg.mxu0
    %840 = vmatpush.msra.mxu0 0.0
    %841 = vmatpush.msra.mxu0 0.0
    %842 = vmatpush.msra.mxu0 0.0
    %843 = vmatpush.msra.mxu0 0.0
    %844 = vmatpush.msra.mxu0 0.0
    %845 = vmatpush.msra.mxu0 0.0
    %846 = vmatpush.msra.mxu0 0.0
    %847 = vmatpush.msra.mxu0 0.0
    %848 = vmatpush.msra.mxu0 %v93
    %849 = vmatpush.msra.mxu0 %v92
    %850 = vmatpush.msra.mxu0 %v91
    %851 = vmatpush.msra.mxu0 %v90
    %852 = vmatpush.msra.mxu0 %v89
    %853 = vmatpush.msra.mxu0 %v88
    %854 = vmatpush.msra.mxu0 %v87
    %855 = vmatpush.msra.mxu0 %v86
    %856 = vmatmul.f32.gmra.mxu0 %v798
    %v857 = vpop.f32.mrf.mxu0
    %v858 = vadd.f32 %v154, %v857
    %859 = vdwg.mxu0
    %v860 = vadd.f32 %v794, %v818
    %v861 = vxor.u32 %v860, 2147483648
    %v862 = vmul.f32 %v861, 1.442695
    %v863 = vpow.pop %v862
    %v864 = vadd.f32 %v863, 1.0
    %v865 = vrcp.pop %v864
    %v866 = vmul.f32 %v864, %v865
    %v867 = vsub.f32 1.0, %v866
    %v868 = vmul.f32 %v865, %v867
    %v869 = vadd.f32 %v865, %v868
    %vm870 = vweird.f32 %v864
    %vm871 = vweird.f32 %v865
    %vm872 = vmor %vm870, %vm871
    %v873 = vsel %vm872, %v865, %v869
    %v874 = vand.u32 2147483647, %v864
    %vm875 = vcmp.eq.f32.partialorder %v874, 8.507059e+37
    %v876 = vand.u32 %v864, 2147483648
    %v877 = vor.u32 1.1754944e-38, %v876
    %v878 = vsel %vm875, %v877, %v873
    %v879 = vmul.f32 1.0, %v878
    %v880 = vadd.f32 %v795, %v838
    %v881 = vxor.u32 %v880, 2147483648
    %v882 = vmul.f32 %v881, 1.442695
    %v883 = vpow.pop %v882
    %v884 = vadd.f32 %v883, 1.0
    %v885 = vrcp.pop %v884
    %v886 = vmul.f32 %v884, %v885
    %v887 = vsub.f32 1.0, %v886
    %v888 = vmul.f32 %v885, %v887
    %v889 = vadd.f32 %v885, %v888
    %vm890 = vweird.f32 %v884
    %vm891 = vweird.f32 %v885
    %vm892 = vmor %vm890, %vm891
    %v893 = vsel %vm892, %v885, %v889
    %v894 = vand.u32 2147483647, %v884
    %vm895 = vcmp.eq.f32.partialorder %v894, 8.507059e+37
    %v896 = vand.u32 %v884, 2147483648
    %v897 = vor.u32 1.1754944e-38, %v896
    %v898 = vsel %vm895, %v897, %v893
    %v899 = vmul.f32 1.0, %v898
    %v900 = vmul.f32 %v879, %v858
    %v901 = vadd.f32 %v796, %v900
    %v902 = vtanh.pop %v901
    %v903 = vsub.f32 1.0, %v899
    %v904 = vmul.f32 %v903, %v902
    %v905 = vmul.f32 %v899, %v792
    %v906 = vadd.f32 %v904, %v905
    %s907 = scalar_lea.vmem [#allocation3], 168
    %v908 = vld [vmem:[%s907] sm:$0xff]
    %v909 = vld [vmem:[%s907 + $0x8] sm:$0xff]
    %v910 = vld [vmem:[%s907 + $0x10] sm:$0xff]
    %v912 = vsel %vm106, %v906, 0
    %914 = vmatpush.msra.mxu0 0.0
    %915 = vmatpush.msra.mxu0 0.0
    %916 = vmatpush.msra.mxu0 0.0
    %917 = vmatpush.msra.mxu0 0.0
    %918 = vmatpush.msra.mxu0 0.0
    %919 = vmatpush.msra.mxu0 0.0
    %920 = vmatpush.msra.mxu0 0.0
    %921 = vmatpush.msra.mxu0 0.0
    %922 = vmatpush.msra.mxu0 %v75
    %923 = vmatpush.msra.mxu0 %v74
    %924 = vmatpush.msra.mxu0 %v73
    %925 = vmatpush.msra.mxu0 %v72
    %926 = vmatpush.msra.mxu0 %v71
    %927 = vmatpush.msra.mxu0 %v70
    %928 = vmatpush.msra.mxu0 %v69
    %929 = vmatpush.msra.mxu0 %v68
    %930 = vmatmul.f32.gmra.mxu0 %v912
    %v931 = vpop.f32.mrf.mxu0
    %v932 = vadd.f32 %v104, %v931
    %933 = vdwg.mxu0
    %934 = vmatpush.msra.mxu0 0.0
    %935 = vmatpush.msra.mxu0 0.0
    %936 = vmatpush.msra.mxu0 0.0
    %937 = vmatpush.msra.mxu0 0.0
    %938 = vmatpush.msra.mxu0 0.0
    %939 = vmatpush.msra.mxu0 0.0
    %940 = vmatpush.msra.mxu0 0.0
    %941 = vmatpush.msra.mxu0 0.0
    %942 = vmatpush.msra.mxu0 %v84
    %943 = vmatpush.msra.mxu0 %v83
    %944 = vmatpush.msra.mxu0 %v82
    %945 = vmatpush.msra.mxu0 %v81
    %946 = vmatpush.msra.mxu0 %v80
    %947 = vmatpush.msra.mxu0 %v79
    %948 = vmatpush.msra.mxu0 %v78
    %949 = vmatpush.msra.mxu0 %v77
    %950 = vmatmul.f32.gmra.mxu0 %v912
    %v951 = vpop.f32.mrf.mxu0
    %v952 = vadd.f32 %v131, %v951
    %953 = vdwg.mxu0
    %954 = vmatpush.msra.mxu0 0.0
    %955 = vmatpush.msra.mxu0 0.0
    %956 = vmatpush.msra.mxu0 0.0
    %957 = vmatpush.msra.mxu0 0.0
    %958 = vmatpush.msra.mxu0 0.0
    %959 = vmatpush.msra.mxu0 0.0
    %960 = vmatpush.msra.mxu0 0.0
    %961 = vmatpush.msra.mxu0 0.0
    %962 = vmatpush.msra.mxu0 %v93
    %963 = vmatpush.msra.mxu0 %v92
    %964 = vmatpush.msra.mxu0 %v91
    %965 = vmatpush.msra.mxu0 %v90
    %966 = vmatpush.msra.mxu0 %v89
    %967 = vmatpush.msra.mxu0 %v88
    %968 = vmatpush.msra.mxu0 %v87
    %969 = vmatpush.msra.mxu0 %v86
    %970 = vmatmul.f32.gmra.mxu0 %v912
    %v971 = vpop.f32.mrf.mxu0
    %v972 = vadd.f32 %v154, %v971
    %973 = vdwg.mxu0
    %v974 = vadd.f32 %v908, %v932
    %v975 = vxor.u32 %v974, 2147483648
    %v976 = vmul.f32 %v975, 1.442695
    %v977 = vpow.pop %v976
    %v978 = vadd.f32 %v977, 1.0
    %v979 = vrcp.pop %v978
    %v980 = vmul.f32 %v978, %v979
    %v981 = vsub.f32 1.0, %v980
    %v982 = vmul.f32 %v979, %v981
    %v983 = vadd.f32 %v979, %v982
    %vm984 = vweird.f32 %v978
    %vm985 = vweird.f32 %v979
    %vm986 = vmor %vm984, %vm985
    %v987 = vsel %vm986, %v979, %v983
    %v988 = vand.u32 2147483647, %v978
    %vm989 = vcmp.eq.f32.partialorder %v988, 8.507059e+37
    %v990 = vand.u32 %v978, 2147483648
    %v991 = vor.u32 1.1754944e-38, %v990
    %v992 = vsel %vm989, %v991, %v987
    %v993 = vmul.f32 1.0, %v992
    %v994 = vadd.f32 %v909, %v952
    %v995 = vxor.u32 %v994, 2147483648
    %v996 = vmul.f32 %v995, 1.442695
    %v997 = vpow.pop %v996
    %v998 = vadd.f32 %v997, 1.0
    %v999 = vrcp.pop %v998
    %v1000 = vmul.f32 %v998, %v999
    %v1001 = vsub.f32 1.0, %v1000
    %v1002 = vmul.f32 %v999, %v1001
    %v1003 = vadd.f32 %v999, %v1002
    %vm1004 = vweird.f32 %v998
    %vm1005 = vweird.f32 %v999
    %vm1006 = vmor %vm1004, %vm1005
    %v1007 = vsel %vm1006, %v999, %v1003
    %v1008 = vand.u32 2147483647, %v998
    %vm1009 = vcmp.eq.f32.partialorder %v1008, 8.507059e+37
    %v1010 = vand.u32 %v998, 2147483648
    %v1011 = vor.u32 1.1754944e-38, %v1010
    %v1012 = vsel %vm1009, %v1011, %v1007
    %v1013 = vmul.f32 1.0, %v1012
    %v1014 = vmul.f32 %v993, %v972
    %v1015 = vadd.f32 %v910, %v1014
    %v1016 = vtanh.pop %v1015
    %v1017 = vsub.f32 1.0, %v1013
    %v1018 = vmul.f32 %v1017, %v1016
    %v1019 = vmul.f32 %v1013, %v906
    %v1020 = vadd.f32 %v1018, %v1019
    %1021 = vst.msk [vmem:[#allocation2] sm:$0xff] %vm106, %v1020
    // Predicated region
    $region30: #{tpu_custom_call.1} parent=1 // pred_check
      %p1022 = pneg %p62
    $region31: #{tpu_custom_call.1} parent=1 // pred_check_branch
      %1024 = sbr.rel (%p1022) target = $region33
    $region32: #{tpu_custom_call.1} parent=1 // pred_region
      %1025 = vst.msk [vmem:[#allocation9] sm:$0xff] %vm106, %v1020
    $region33: #{tpu_custom_call.1} parent=1 // pred_fallthru
      _
    // Predicated region
    $region34: #{tpu_custom_call.1} parent=1 // pred_check
      _
    $region35: #{tpu_custom_call.1} parent=1 // pred_check_branch
      %1027 = sbr.rel (0) target = $region37
    $region36: #{tpu_custom_call.1} parent=1 // pred_region
      %1029 = vsyncadd [#allocation5], 0
      %s1031 = sshll.u32 [#allocation9], 4
      %s1032 = int_to_ptr.vmem [resolvable:$true] %s1031
      %s1033 = sshll.u32 %s3, 4
      %s1034 = int_to_ptr.hbm [resolvable:$true] %s1033
      %1036 = dma.vmem_to_hbm [thread:$0]  %s1032, 128, %s1034, [#allocation5]
    $region37: #{tpu_custom_call.1} parent=1 // pred_fallthru
      _
    // Predicated region
    $region38: #{tpu_custom_call.1} parent=1 // pred_check
      _
    $region39: #{tpu_custom_call.1} parent=1 // pred_check_branch
      %1038 = sbr.rel (0) target = $region41
    $region40: #{tpu_custom_call.1} parent=1 // pred_region
      %1040 = dma.done [#allocation5], 128
    $region41: #{tpu_custom_call.1} parent=1 // pred_fallthru
      _
    %1041 = vsyncpa [#allocation4], 1
    %1042 = vsyncpa [#allocation7], 1
    %1043 = vsyncpa [#allocation5], 1

</llo_original>
